<compile_context>
chip_gen: v6e
topology: v6e:2x2x1
jax: 0.10.0
libtpu: 0.0.40
codegen_flags: <defaults>
</compile_context>

<pallas_src>
import jax
import jax.numpy as jnp
from jax.experimental import pallas as pl
from jax.experimental.pallas import tpu as pltpu

HIDDEN = 64


def _lstm_kernel(x_ref, wih_ref, b_ref, h0_ref, c0_ref, whh_ref, wout_ref,
                 bout_ref, y_ref, hn_ref, cn_ref, xg_scr):
    """Fused LSTM forward: input projection + recurrence + per-step Linear(H->1).

    x_ref   : (T*B, I)  time-major rows (row t*B + b)
    wih_ref : (I, 4H)   input weight, gate column order [i, f, o, g]
    b_ref   : (1, 4H)   b_ih + b_hh, same gate order
    h0_ref  : (B, H), c0_ref : (B, H)
    whh_ref : (H, 4H)   recurrent weight, same gate order
    wout_ref: (1, H)    output Linear weight row
    bout_ref: (1, 1)    output Linear bias (SMEM scalar)
    y_ref   : (B, T)    per-step scalar outputs, already batch-major
    hn_ref, cn_ref : (B, H)
    xg_scr  : (T*B, 4H) VMEM scratch for the hoisted input projection
    """
    B, H = h0_ref.shape
    TB = x_ref.shape[0]
    T = TB // B

    # One MXU matmul for the input projection of EVERY timestep (hoisted off the
    # serial recurrence), with the LSTM biases folded in.
    xg_scr[...] = (jnp.dot(x_ref[...], wih_ref[...],
                           preferred_element_type=jnp.float32) + b_ref[...])

    # (H, 4H) resident in vregs (16 vregs at H=64).  If H grows past 64, keep it
    # behind the ref instead to avoid spills.
    whh = whh_ref[...]
    w_row = wout_ref[...]                                         # (1, H)
    lane_t = jax.lax.broadcasted_iota(jnp.int32, (B, T), 1)       # time index per column

    h = h0_ref[...]
    c = c0_ref[...]
    y_acc = jnp.zeros((B, T), jnp.float32)

    # Static fully-unrolled recurrence (T is small here).  For T in the hundreds,
    # switch to a partially unrolled lax.fori_loop / time-chunked grid so code
    # size and resident VMEM stay bounded.
    for t in range(T):
        # Only the recurrent projection sits on the serialized dependence chain.
        gates = xg_scr[pl.ds(t * B, B), :] + jnp.dot(
            h, whh, preferred_element_type=jnp.float32)           # (B, 4H) [i,f,o,g]
        # Two batched EUP passes over whole vregs; slice AFTER activation.
        sig = jax.nn.sigmoid(gates[:, :3 * H])                    # i, f, o together
        g_g = jnp.tanh(gates[:, 3 * H:])                          # g
        i_g = sig[:, :H]
        f_g = sig[:, H:2 * H]
        o_g = sig[:, 2 * H:]
        c = f_g * c + i_g * g_g
        h = o_g * jnp.tanh(c)
        # Per-step Linear(H->1): VPU mul + lane reduce, off the critical path.
        # Accumulated via lane-select so the output is ONE dense (B, T) store at
        # the end (no T masked column stores, no wrapper-side transpose).
        y_t = jnp.sum(h * w_row, axis=-1, keepdims=True)          # (B, 1)
        y_acc = jnp.where(lane_t == t, y_t, y_acc)

    y_ref[...] = y_acc + bout_ref[0, 0]
    hn_ref[...] = h
    cn_ref[...] = c


@jax.jit
def rnn_stock_forward(x, h_state, params):
    """x: (B, T, I) float32 batch_first, h_state = (h0, c0) each (1, B, H).

    Returns (outs, (h_n, c_n)) with outs: (B, T, 1), h_n/c_n: (1, B, H),
    matching RNN_stock.forward.
    """
    w_ih, w_hh, b_sum, w_out_row, b_out = params
    B, T, I = x.shape
    H = HIDDEN
    G = 4 * H

    # Pure layout plumbing (~1 KiB copy): time-major rows so the in-kernel input
    # projection yields per-step (B, 4H) slabs at contiguous row offsets.
    x_tm = jnp.transpose(x, (1, 0, 2)).reshape(T * B, I).astype(jnp.float32)
    h0 = h_state[0].reshape(B, H).astype(jnp.float32)
    c0 = h_state[1].reshape(B, H).astype(jnp.float32)

    vmem = pl.BlockSpec(memory_space=pltpu.MemorySpace.VMEM)
    smem = pl.BlockSpec(memory_space=pltpu.MemorySpace.SMEM)

    # Advisory cost hint for XLA scheduling around this latency-bound call.
    flops = 2 * T * B * I * G + 2 * T * B * H * G + 14 * T * B * H
    transcendentals = 5 * T * B * H
    resident_bytes = 4 * (2 * T * B * G + T * B * I + I * G + G + H * G
                          + 4 * B * H + H + 1 + B * T)
    # Explicit scoped-VMEM headroom (v5e defaults to only 16 MiB).
    vmem_limit = int(min(64 * 1024 * 1024, max(8 * 1024 * 1024, 2 * resident_bytes)))

    y, h_n, c_n = pl.pallas_call(
        _lstm_kernel,
        out_shape=(
            jax.ShapeDtypeStruct((B, T), jnp.float32),
            jax.ShapeDtypeStruct((B, H), jnp.float32),
            jax.ShapeDtypeStruct((B, H), jnp.float32),
        ),
        in_specs=[vmem, vmem, vmem, vmem, vmem, vmem, vmem, smem],
        out_specs=(vmem, vmem, vmem),
        scratch_shapes=[pltpu.VMEM((T * B, G), jnp.float32)],
        compiler_params=pltpu.CompilerParams(vmem_limit_bytes=vmem_limit),
        cost_estimate=pl.CostEstimate(flops=flops,
                                      transcendentals=transcendentals,
                                      bytes_accessed=resident_bytes),
    )(x_tm,
      w_ih.astype(jnp.float32), b_sum.astype(jnp.float32),
      h0, c0,
      w_hh.astype(jnp.float32), w_out_row.astype(jnp.float32),
      b_out.astype(jnp.float32))

    outs = y[..., None]                                           # (B, T, 1)
    return outs, (h_n[None], c_n[None])


def init_params(key, input_size, hidden=HIDDEN):
    """PyTorch-style init (uniform(-1/sqrt(H), 1/sqrt(H))) converted to kernel layout.

    Torch tensors: weight_ih_l0 (4H, I), weight_hh_l0 (4H, H), bias_ih_l0 (4H,),
    bias_hh_l0 (4H,) with gate-chunk order [i, f, g, o]; out.weight (1, H),
    out.bias (1,).

    Kernel layout: weights transposed for right-multiplication, the two LSTM
    biases summed, and gate columns reordered to [i, f, o, g] so the kernel can
    batch activations (sigmoid over the first 3H columns, tanh over the last H).
    """
    H = hidden
    k = 1.0 / jnp.sqrt(jnp.float32(H))
    keys = jax.random.split(key, 6)
    w_ih_t = jax.random.uniform(keys[0], (4 * H, input_size), jnp.float32, -k, k)
    w_hh_t = jax.random.uniform(keys[1], (4 * H, H), jnp.float32, -k, k)
    b_ih = jax.random.uniform(keys[2], (4 * H,), jnp.float32, -k, k)
    b_hh = jax.random.uniform(keys[3], (4 * H,), jnp.float32, -k, k)
    w_out = jax.random.uniform(keys[4], (1, H), jnp.float32, -k, k)
    b_out = jax.random.uniform(keys[5], (1,), jnp.float32, -k, k)

    def to_ifog(w):  # torch gate order [i,f,g,o] (axis 0) -> kernel order [i,f,o,g]
        i, f, g, o = jnp.split(w, 4, axis=0)
        return jnp.concatenate([i, f, o, g], axis=0)

    w_ih = jnp.transpose(to_ifog(w_ih_t))                 # (I, 4H)
    w_hh = jnp.transpose(to_ifog(w_hh_t))                 # (H, 4H)
    b_sum = to_ifog(b_ih + b_hh).reshape(1, 4 * H)        # (1, 4H)
    return (w_ih, w_hh, b_sum, w_out, b_out.reshape(1, 1))


def _reference_forward(x, h_state, params):
    """Pure-JAX reference (lax.scan LSTM, highest-precision dots)."""
    w_ih, w_hh, b_sum, w_out_row, b_out = params
    H = HIDDEN
    hi = jax.lax.Precision.HIGHEST
    h0 = h_state[0][0]
    c0 = h_state[1][0]

    def step(carry, x_t):
        h, c = carry
        gates = (jnp.dot(x_t, w_ih, precision=hi)
                 + jnp.dot(h, w_hh, precision=hi) + b_sum)
        i = jax.nn.sigmoid(gates[:, 0 * H:1 * H])
        f = jax.nn.sigmoid(gates[:, 1 * H:2 * H])
        o = jax.nn.sigmoid(gates[:, 2 * H:3 * H])
        g = jnp.tanh(gates[:, 3 * H:4 * H])
        c_new = f * c + i * g
        h_new = o * jnp.tanh(c_new)
        y = jnp.dot(h_new, w_out_row.T, precision=hi) + b_out
        return (h_new, c_new), y

    (h_n, c_n), ys = jax.lax.scan(step, (h0, c0), jnp.transpose(x, (1, 0, 2)))
    return jnp.transpose(ys, (1, 0, 2)), (h_n[None], c_n[None])


if __name__ == "__main__":
    B, T, INPUT_SIZE = 2, 8, 16

    key = jax.random.PRNGKey(0)
    kx, kh, kc, kp = jax.random.split(key, 4)

    x = jax.random.normal(kx, (B, T, INPUT_SIZE), jnp.float32)
    h0 = jax.random.normal(kh, (1, B, HIDDEN), jnp.float32)
    c0 = jax.random.normal(kc, (1, B, HIDDEN), jnp.float32)
    params = init_params(kp, INPUT_SIZE)

    outs, (h_n, c_n) = rnn_stock_forward(x, (h0, c0), params)
    jax.block_until_ready((outs, h_n, c_n))

    # Sanity check against pure-JAX reference.
    ref_outs, (ref_h, ref_c) = _reference_forward(x, (h0, c0), params)
    assert outs.shape == (B, T, 1)
    assert h_n.shape == (1, B, HIDDEN) and c_n.shape == (1, B, HIDDEN)
    assert jnp.allclose(outs, ref_outs, atol=1e-4, rtol=1e-4)
    assert jnp.allclose(h_n, ref_h, atol=1e-4, rtol=1e-4)
    assert jnp.allclose(c_n, ref_c, atol=1e-4, rtol=1e-4)

    print("KERNEL_OK")
</pallas_src>

<mosaic_0001>
module attributes {stable_mosaic.version = 11 : i64} {
  func.func @_lstm_kernel(%arg0: memref<16x16xf32, #tpu.memory_space<vmem>>, %arg1: memref<16x256xf32, #tpu.memory_space<vmem>>, %arg2: memref<1x256xf32, #tpu.memory_space<vmem>>, %arg3: memref<2x64xf32, #tpu.memory_space<vmem>>, %arg4: memref<2x64xf32, #tpu.memory_space<vmem>>, %arg5: memref<64x256xf32, #tpu.memory_space<vmem>>, %arg6: memref<1x64xf32, #tpu.memory_space<vmem>>, %arg7: memref<1x1xf32, #tpu.memory_space<smem>>, %arg8: memref<2x8xf32, #tpu.memory_space<vmem>>, %arg9: memref<2x64xf32, #tpu.memory_space<vmem>>, %arg10: memref<2x64xf32, #tpu.memory_space<vmem>>, %arg11: memref<16x256xf32, #tpu.memory_space<vmem>>) attributes {dimension_semantics = [], scalar_prefetch = 0 : i64, scratch_operands = 1 : i64, tpu.core_type = #tpu.core_type<tc>} {
    %c0 = arith.constant 0 : index
    %c0_0 = arith.constant 0 : index
    %0 = vector.load %arg0[%c0, %c0_0] : memref<16x16xf32, #tpu.memory_space<vmem>>, vector<16x16xf32>
    %c0_1 = arith.constant 0 : index
    %c0_2 = arith.constant 0 : index
    %1 = vector.load %arg1[%c0_1, %c0_2] : memref<16x256xf32, #tpu.memory_space<vmem>>, vector<16x256xf32>
    %cst = arith.constant dense<0.000000e+00> : vector<16x256xf32>
    %2 = tpu.matmul %0, %1, %cst {dimension_numbers = #tpu.dot_dimension_numbers<[1], [0], [0], [1], [0, 0, 1, 1], [], []>} : vector<16x16xf32>, vector<16x256xf32>, vector<16x256xf32> -> vector<16x256xf32>
    %c0_3 = arith.constant 0 : index
    %c0_4 = arith.constant 0 : index
    %3 = vector.load %arg2[%c0_3, %c0_4] : memref<1x256xf32, #tpu.memory_space<vmem>>, vector<1x256xf32>
    %4 = vector.broadcast %3 : vector<1x256xf32> to vector<16x256xf32>
    %5 = arith.addf %2, %4 : vector<16x256xf32>
    %c0_5 = arith.constant 0 : index
    %c0_6 = arith.constant 0 : index
    %6 = vector.load %arg11[%c0_5, %c0_6] : memref<16x256xf32, #tpu.memory_space<vmem>>, vector<16x256xf32>
    tpu.vector_store %arg11[%c0_5, %c0_6], %5 {strides = array<i32>} : memref<16x256xf32, #tpu.memory_space<vmem>>, vector<16x256xf32>,
    %c0_7 = arith.constant 0 : index
    %c0_8 = arith.constant 0 : index
    %7 = vector.load %arg5[%c0_7, %c0_8] : memref<64x256xf32, #tpu.memory_space<vmem>>, vector<64x256xf32>
    %c0_9 = arith.constant 0 : index
    %c0_10 = arith.constant 0 : index
    %8 = vector.load %arg6[%c0_9, %c0_10] : memref<1x64xf32, #tpu.memory_space<vmem>>, vector<1x64xf32>
    %9 = tpu.iota {dimensions = array<i32: 1>} : vector<2x8xi32>
    %c0_11 = arith.constant 0 : index
    %c0_12 = arith.constant 0 : index
    %10 = vector.load %arg3[%c0_11, %c0_12] : memref<2x64xf32, #tpu.memory_space<vmem>>, vector<2x64xf32>
    %c0_13 = arith.constant 0 : index
    %c0_14 = arith.constant 0 : index
    %11 = vector.load %arg4[%c0_13, %c0_14] : memref<2x64xf32, #tpu.memory_space<vmem>>, vector<2x64xf32>
    %cst_15 = arith.constant 0.000000e+00 : f32
    %12 = vector.broadcast %cst_15 : f32 to vector<2x8xf32>
    %c0_16 = arith.constant 0 : index
    %c0_17 = arith.constant 0 : index
    %13 = vector.load %arg11[%c0_16, %c0_17] : memref<16x256xf32, #tpu.memory_space<vmem>>, vector<2x256xf32>
    %cst_18 = arith.constant dense<0.000000e+00> : vector<2x256xf32>
    %14 = tpu.matmul %10, %7, %cst_18 {dimension_numbers = #tpu.dot_dimension_numbers<[1], [0], [0], [1], [0, 0, 1, 1], [], []>} : vector<2x64xf32>, vector<64x256xf32>, vector<2x256xf32> -> vector<2x256xf32>
    %15 = arith.addf %13, %14 : vector<2x256xf32>
    %16 = vector.extract_strided_slice %15 {offsets = [0, 0], sizes = [2, 192], strides = [1, 1]} : vector<2x256xf32> to vector<2x192xf32>
    %17 = arith.negf %16 : vector<2x192xf32>
    %18 = math.exp %17 : vector<2x192xf32>
    %cst_19 = arith.constant 1.000000e+00 : f32
    %19 = vector.broadcast %cst_19 : f32 to vector<2x192xf32>
    %20 = arith.addf %19, %18 : vector<2x192xf32>
    %21 = arith.divf %19, %20 : vector<2x192xf32>
    %22 = vector.extract_strided_slice %15 {offsets = [0, 192], sizes = [2, 64], strides = [1, 1]} : vector<2x256xf32> to vector<2x64xf32>
    %23 = math.tanh %22 : vector<2x64xf32>
    %24 = vector.extract_strided_slice %21 {offsets = [0, 0], sizes = [2, 64], strides = [1, 1]} : vector<2x192xf32> to vector<2x64xf32>
    %25 = vector.extract_strided_slice %21 {offsets = [0, 64], sizes = [2, 64], strides = [1, 1]} : vector<2x192xf32> to vector<2x64xf32>
    %26 = vector.extract_strided_slice %21 {offsets = [0, 128], sizes = [2, 64], strides = [1, 1]} : vector<2x192xf32> to vector<2x64xf32>
    %27 = arith.mulf %25, %11 : vector<2x64xf32>
    %28 = arith.mulf %24, %23 : vector<2x64xf32>
    %29 = arith.addf %27, %28 : vector<2x64xf32>
    %30 = math.tanh %29 : vector<2x64xf32>
    %31 = arith.mulf %26, %30 : vector<2x64xf32>
    %32 = vector.broadcast %8 : vector<1x64xf32> to vector<2x64xf32>
    %33 = arith.mulf %31, %32 : vector<2x64xf32>
    %cst_20 = arith.constant dense<0.000000e+00> : vector<2xf32>
    %34 = vector.multi_reduction <add>, %33, %cst_20 [1] : vector<2x64xf32> to vector<2xf32>
    %35 = vector.shape_cast %34 : vector<2xf32> to vector<2x1xf32>
    %c0_i32 = arith.constant 0 : i32
    %36 = vector.broadcast %c0_i32 : i32 to vector<2x8xi32>
    %37 = arith.cmpi eq, %9, %36 : vector<2x8xi32>
    %38 = vector.shape_cast %35 : vector<2x1xf32> to vector<2x1xf32>
    %39 = vector.broadcast %38 : vector<2x1xf32> to vector<2x8xf32>
    %40 = arith.select %37, %39, %12 : vector<2x8xi1>, vector<2x8xf32>
    %c2 = arith.constant 2 : index
    %c0_21 = arith.constant 0 : index
    %41 = vector.load %arg11[%c2, %c0_21] : memref<16x256xf32, #tpu.memory_space<vmem>>, vector<2x256xf32>
    %cst_22 = arith.constant dense<0.000000e+00> : vector<2x256xf32>
    %42 = tpu.matmul %31, %7, %cst_22 {dimension_numbers = #tpu.dot_dimension_numbers<[1], [0], [0], [1], [0, 0, 1, 1], [], []>} : vector<2x64xf32>, vector<64x256xf32>, vector<2x256xf32> -> vector<2x256xf32>
    %43 = arith.addf %41, %42 : vector<2x256xf32>
    %44 = vector.extract_strided_slice %43 {offsets = [0, 0], sizes = [2, 192], strides = [1, 1]} : vector<2x256xf32> to vector<2x192xf32>
    %45 = arith.negf %44 : vector<2x192xf32>
    %46 = math.exp %45 : vector<2x192xf32>
    %cst_23 = arith.constant 1.000000e+00 : f32
    %47 = vector.broadcast %cst_23 : f32 to vector<2x192xf32>
    %48 = arith.addf %47, %46 : vector<2x192xf32>
    %49 = arith.divf %47, %48 : vector<2x192xf32>
    %50 = vector.extract_strided_slice %43 {offsets = [0, 192], sizes = [2, 64], strides = [1, 1]} : vector<2x256xf32> to vector<2x64xf32>
    %51 = math.tanh %50 : vector<2x64xf32>
    %52 = vector.extract_strided_slice %49 {offsets = [0, 0], sizes = [2, 64], strides = [1, 1]} : vector<2x192xf32> to vector<2x64xf32>
    %53 = vector.extract_strided_slice %49 {offsets = [0, 64], sizes = [2, 64], strides = [1, 1]} : vector<2x192xf32> to vector<2x64xf32>
    %54 = vector.extract_strided_slice %49 {offsets = [0, 128], sizes = [2, 64], strides = [1, 1]} : vector<2x192xf32> to vector<2x64xf32>
    %55 = arith.mulf %53, %29 : vector<2x64xf32>
    %56 = arith.mulf %52, %51 : vector<2x64xf32>
    %57 = arith.addf %55, %56 : vector<2x64xf32>
    %58 = math.tanh %57 : vector<2x64xf32>
    %59 = arith.mulf %54, %58 : vector<2x64xf32>
    %60 = vector.broadcast %8 : vector<1x64xf32> to vector<2x64xf32>
    %61 = arith.mulf %59, %60 : vector<2x64xf32>
    %cst_24 = arith.constant dense<0.000000e+00> : vector<2xf32>
    %62 = vector.multi_reduction <add>, %61, %cst_24 [1] : vector<2x64xf32> to vector<2xf32>
    %63 = vector.shape_cast %62 : vector<2xf32> to vector<2x1xf32>
    %c1_i32 = arith.constant 1 : i32
    %64 = vector.broadcast %c1_i32 : i32 to vector<2x8xi32>
    %65 = arith.cmpi eq, %9, %64 : vector<2x8xi32>
    %66 = vector.shape_cast %63 : vector<2x1xf32> to vector<2x1xf32>
    %67 = vector.broadcast %66 : vector<2x1xf32> to vector<2x8xf32>
    %68 = arith.select %65, %67, %40 : vector<2x8xi1>, vector<2x8xf32>
    %c4 = arith.constant 4 : index
    %c0_25 = arith.constant 0 : index
    %69 = vector.load %arg11[%c4, %c0_25] : memref<16x256xf32, #tpu.memory_space<vmem>>, vector<2x256xf32>
    %cst_26 = arith.constant dense<0.000000e+00> : vector<2x256xf32>
    %70 = tpu.matmul %59, %7, %cst_26 {dimension_numbers = #tpu.dot_dimension_numbers<[1], [0], [0], [1], [0, 0, 1, 1], [], []>} : vector<2x64xf32>, vector<64x256xf32>, vector<2x256xf32> -> vector<2x256xf32>
    %71 = arith.addf %69, %70 : vector<2x256xf32>
    %72 = vector.extract_strided_slice %71 {offsets = [0, 0], sizes = [2, 192], strides = [1, 1]} : vector<2x256xf32> to vector<2x192xf32>
    %73 = arith.negf %72 : vector<2x192xf32>
    %74 = math.exp %73 : vector<2x192xf32>
    %cst_27 = arith.constant 1.000000e+00 : f32
    %75 = vector.broadcast %cst_27 : f32 to vector<2x192xf32>
    %76 = arith.addf %75, %74 : vector<2x192xf32>
    %77 = arith.divf %75, %76 : vector<2x192xf32>
    %78 = vector.extract_strided_slice %71 {offsets = [0, 192], sizes = [2, 64], strides = [1, 1]} : vector<2x256xf32> to vector<2x64xf32>
    %79 = math.tanh %78 : vector<2x64xf32>
    %80 = vector.extract_strided_slice %77 {offsets = [0, 0], sizes = [2, 64], strides = [1, 1]} : vector<2x192xf32> to vector<2x64xf32>
    %81 = vector.extract_strided_slice %77 {offsets = [0, 64], sizes = [2, 64], strides = [1, 1]} : vector<2x192xf32> to vector<2x64xf32>
    %82 = vector.extract_strided_slice %77 {offsets = [0, 128], sizes = [2, 64], strides = [1, 1]} : vector<2x192xf32> to vector<2x64xf32>
    %83 = arith.mulf %81, %57 : vector<2x64xf32>
    %84 = arith.mulf %80, %79 : vector<2x64xf32>
    %85 = arith.addf %83, %84 : vector<2x64xf32>
    %86 = math.tanh %85 : vector<2x64xf32>
    %87 = arith.mulf %82, %86 : vector<2x64xf32>
    %88 = vector.broadcast %8 : vector<1x64xf32> to vector<2x64xf32>
    %89 = arith.mulf %87, %88 : vector<2x64xf32>
    %cst_28 = arith.constant dense<0.000000e+00> : vector<2xf32>
    %90 = vector.multi_reduction <add>, %89, %cst_28 [1] : vector<2x64xf32> to vector<2xf32>
    %91 = vector.shape_cast %90 : vector<2xf32> to vector<2x1xf32>
    %c2_i32 = arith.constant 2 : i32
    %92 = vector.broadcast %c2_i32 : i32 to vector<2x8xi32>
    %93 = arith.cmpi eq, %9, %92 : vector<2x8xi32>
    %94 = vector.shape_cast %91 : vector<2x1xf32> to vector<2x1xf32>
    %95 = vector.broadcast %94 : vector<2x1xf32> to vector<2x8xf32>
    %96 = arith.select %93, %95, %68 : vector<2x8xi1>, vector<2x8xf32>
    %c6 = arith.constant 6 : index
    %c0_29 = arith.constant 0 : index
    %97 = vector.load %arg11[%c6, %c0_29] : memref<16x256xf32, #tpu.memory_space<vmem>>, vector<2x256xf32>
    %cst_30 = arith.constant dense<0.000000e+00> : vector<2x256xf32>
    %98 = tpu.matmul %87, %7, %cst_30 {dimension_numbers = #tpu.dot_dimension_numbers<[1], [0], [0], [1], [0, 0, 1, 1], [], []>} : vector<2x64xf32>, vector<64x256xf32>, vector<2x256xf32> -> vector<2x256xf32>
    %99 = arith.addf %97, %98 : vector<2x256xf32>
    %100 = vector.extract_strided_slice %99 {offsets = [0, 0], sizes = [2, 192], strides = [1, 1]} : vector<2x256xf32> to vector<2x192xf32>
    %101 = arith.negf %100 : vector<2x192xf32>
    %102 = math.exp %101 : vector<2x192xf32>
    %cst_31 = arith.constant 1.000000e+00 : f32
    %103 = vector.broadcast %cst_31 : f32 to vector<2x192xf32>
    %104 = arith.addf %103, %102 : vector<2x192xf32>
    %105 = arith.divf %103, %104 : vector<2x192xf32>
    %106 = vector.extract_strided_slice %99 {offsets = [0, 192], sizes = [2, 64], strides = [1, 1]} : vector<2x256xf32> to vector<2x64xf32>
    %107 = math.tanh %106 : vector<2x64xf32>
    %108 = vector.extract_strided_slice %105 {offsets = [0, 0], sizes = [2, 64], strides = [1, 1]} : vector<2x192xf32> to vector<2x64xf32>
    %109 = vector.extract_strided_slice %105 {offsets = [0, 64], sizes = [2, 64], strides = [1, 1]} : vector<2x192xf32> to vector<2x64xf32>
    %110 = vector.extract_strided_slice %105 {offsets = [0, 128], sizes = [2, 64], strides = [1, 1]} : vector<2x192xf32> to vector<2x64xf32>
    %111 = arith.mulf %109, %85 : vector<2x64xf32>
    %112 = arith.mulf %108, %107 : vector<2x64xf32>
    %113 = arith.addf %111, %112 : vector<2x64xf32>
    %114 = math.tanh %113 : vector<2x64xf32>
    %115 = arith.mulf %110, %114 : vector<2x64xf32>
    %116 = vector.broadcast %8 : vector<1x64xf32> to vector<2x64xf32>
    %117 = arith.mulf %115, %116 : vector<2x64xf32>
    %cst_32 = arith.constant dense<0.000000e+00> : vector<2xf32>
    %118 = vector.multi_reduction <add>, %117, %cst_32 [1] : vector<2x64xf32> to vector<2xf32>
    %119 = vector.shape_cast %118 : vector<2xf32> to vector<2x1xf32>
    %c3_i32 = arith.constant 3 : i32
    %120 = vector.broadcast %c3_i32 : i32 to vector<2x8xi32>
    %121 = arith.cmpi eq, %9, %120 : vector<2x8xi32>
    %122 = vector.shape_cast %119 : vector<2x1xf32> to vector<2x1xf32>
    %123 = vector.broadcast %122 : vector<2x1xf32> to vector<2x8xf32>
    %124 = arith.select %121, %123, %96 : vector<2x8xi1>, vector<2x8xf32>
    %c8 = arith.constant 8 : index
    %c0_33 = arith.constant 0 : index
    %125 = vector.load %arg11[%c8, %c0_33] : memref<16x256xf32, #tpu.memory_space<vmem>>, vector<2x256xf32>
    %cst_34 = arith.constant dense<0.000000e+00> : vector<2x256xf32>
    %126 = tpu.matmul %115, %7, %cst_34 {dimension_numbers = #tpu.dot_dimension_numbers<[1], [0], [0], [1], [0, 0, 1, 1], [], []>} : vector<2x64xf32>, vector<64x256xf32>, vector<2x256xf32> -> vector<2x256xf32>
    %127 = arith.addf %125, %126 : vector<2x256xf32>
    %128 = vector.extract_strided_slice %127 {offsets = [0, 0], sizes = [2, 192], strides = [1, 1]} : vector<2x256xf32> to vector<2x192xf32>
    %129 = arith.negf %128 : vector<2x192xf32>
    %130 = math.exp %129 : vector<2x192xf32>
    %cst_35 = arith.constant 1.000000e+00 : f32
    %131 = vector.broadcast %cst_35 : f32 to vector<2x192xf32>
    %132 = arith.addf %131, %130 : vector<2x192xf32>
    %133 = arith.divf %131, %132 : vector<2x192xf32>
    %134 = vector.extract_strided_slice %127 {offsets = [0, 192], sizes = [2, 64], strides = [1, 1]} : vector<2x256xf32> to vector<2x64xf32>
    %135 = math.tanh %134 : vector<2x64xf32>
    %136 = vector.extract_strided_slice %133 {offsets = [0, 0], sizes = [2, 64], strides = [1, 1]} : vector<2x192xf32> to vector<2x64xf32>
    %137 = vector.extract_strided_slice %133 {offsets = [0, 64], sizes = [2, 64], strides = [1, 1]} : vector<2x192xf32> to vector<2x64xf32>
    %138 = vector.extract_strided_slice %133 {offsets = [0, 128], sizes = [2, 64], strides = [1, 1]} : vector<2x192xf32> to vector<2x64xf32>
    %139 = arith.mulf %137, %113 : vector<2x64xf32>
    %140 = arith.mulf %136, %135 : vector<2x64xf32>
    %141 = arith.addf %139, %140 : vector<2x64xf32>
    %142 = math.tanh %141 : vector<2x64xf32>
    %143 = arith.mulf %138, %142 : vector<2x64xf32>
    %144 = vector.broadcast %8 : vector<1x64xf32> to vector<2x64xf32>
    %145 = arith.mulf %143, %144 : vector<2x64xf32>
    %cst_36 = arith.constant dense<0.000000e+00> : vector<2xf32>
    %146 = vector.multi_reduction <add>, %145, %cst_36 [1] : vector<2x64xf32> to vector<2xf32>
    %147 = vector.shape_cast %146 : vector<2xf32> to vector<2x1xf32>
    %c4_i32 = arith.constant 4 : i32
    %148 = vector.broadcast %c4_i32 : i32 to vector<2x8xi32>
    %149 = arith.cmpi eq, %9, %148 : vector<2x8xi32>
    %150 = vector.shape_cast %147 : vector<2x1xf32> to vector<2x1xf32>
    %151 = vector.broadcast %150 : vector<2x1xf32> to vector<2x8xf32>
    %152 = arith.select %149, %151, %124 : vector<2x8xi1>, vector<2x8xf32>
    %c10 = arith.constant 10 : index
    %c0_37 = arith.constant 0 : index
    %153 = vector.load %arg11[%c10, %c0_37] : memref<16x256xf32, #tpu.memory_space<vmem>>, vector<2x256xf32>
    %cst_38 = arith.constant dense<0.000000e+00> : vector<2x256xf32>
    %154 = tpu.matmul %143, %7, %cst_38 {dimension_numbers = #tpu.dot_dimension_numbers<[1], [0], [0], [1], [0, 0, 1, 1], [], []>} : vector<2x64xf32>, vector<64x256xf32>, vector<2x256xf32> -> vector<2x256xf32>
    %155 = arith.addf %153, %154 : vector<2x256xf32>
    %156 = vector.extract_strided_slice %155 {offsets = [0, 0], sizes = [2, 192], strides = [1, 1]} : vector<2x256xf32> to vector<2x192xf32>
    %157 = arith.negf %156 : vector<2x192xf32>
    %158 = math.exp %157 : vector<2x192xf32>
    %cst_39 = arith.constant 1.000000e+00 : f32
    %159 = vector.broadcast %cst_39 : f32 to vector<2x192xf32>
    %160 = arith.addf %159, %158 : vector<2x192xf32>
    %161 = arith.divf %159, %160 : vector<2x192xf32>
    %162 = vector.extract_strided_slice %155 {offsets = [0, 192], sizes = [2, 64], strides = [1, 1]} : vector<2x256xf32> to vector<2x64xf32>
    %163 = math.tanh %162 : vector<2x64xf32>
    %164 = vector.extract_strided_slice %161 {offsets = [0, 0], sizes = [2, 64], strides = [1, 1]} : vector<2x192xf32> to vector<2x64xf32>
    %165 = vector.extract_strided_slice %161 {offsets = [0, 64], sizes = [2, 64], strides = [1, 1]} : vector<2x192xf32> to vector<2x64xf32>
    %166 = vector.extract_strided_slice %161 {offsets = [0, 128], sizes = [2, 64], strides = [1, 1]} : vector<2x192xf32> to vector<2x64xf32>
    %167 = arith.mulf %165, %141 : vector<2x64xf32>
    %168 = arith.mulf %164, %163 : vector<2x64xf32>
    %169 = arith.addf %167, %168 : vector<2x64xf32>
    %170 = math.tanh %169 : vector<2x64xf32>
    %171 = arith.mulf %166, %170 : vector<2x64xf32>
    %172 = vector.broadcast %8 : vector<1x64xf32> to vector<2x64xf32>
    %173 = arith.mulf %171, %172 : vector<2x64xf32>
    %cst_40 = arith.constant dense<0.000000e+00> : vector<2xf32>
    %174 = vector.multi_reduction <add>, %173, %cst_40 [1] : vector<2x64xf32> to vector<2xf32>
    %175 = vector.shape_cast %174 : vector<2xf32> to vector<2x1xf32>
    %c5_i32 = arith.constant 5 : i32
    %176 = vector.broadcast %c5_i32 : i32 to vector<2x8xi32>
    %177 = arith.cmpi eq, %9, %176 : vector<2x8xi32>
    %178 = vector.shape_cast %175 : vector<2x1xf32> to vector<2x1xf32>
    %179 = vector.broadcast %178 : vector<2x1xf32> to vector<2x8xf32>
    %180 = arith.select %177, %179, %152 : vector<2x8xi1>, vector<2x8xf32>
    %c12 = arith.constant 12 : index
    %c0_41 = arith.constant 0 : index
    %181 = vector.load %arg11[%c12, %c0_41] : memref<16x256xf32, #tpu.memory_space<vmem>>, vector<2x256xf32>
    %cst_42 = arith.constant dense<0.000000e+00> : vector<2x256xf32>
    %182 = tpu.matmul %171, %7, %cst_42 {dimension_numbers = #tpu.dot_dimension_numbers<[1], [0], [0], [1], [0, 0, 1, 1], [], []>} : vector<2x64xf32>, vector<64x256xf32>, vector<2x256xf32> -> vector<2x256xf32>
    %183 = arith.addf %181, %182 : vector<2x256xf32>
    %184 = vector.extract_strided_slice %183 {offsets = [0, 0], sizes = [2, 192], strides = [1, 1]} : vector<2x256xf32> to vector<2x192xf32>
    %185 = arith.negf %184 : vector<2x192xf32>
    %186 = math.exp %185 : vector<2x192xf32>
    %cst_43 = arith.constant 1.000000e+00 : f32
    %187 = vector.broadcast %cst_43 : f32 to vector<2x192xf32>
    %188 = arith.addf %187, %186 : vector<2x192xf32>
    %189 = arith.divf %187, %188 : vector<2x192xf32>
    %190 = vector.extract_strided_slice %183 {offsets = [0, 192], sizes = [2, 64], strides = [1, 1]} : vector<2x256xf32> to vector<2x64xf32>
    %191 = math.tanh %190 : vector<2x64xf32>
    %192 = vector.extract_strided_slice %189 {offsets = [0, 0], sizes = [2, 64], strides = [1, 1]} : vector<2x192xf32> to vector<2x64xf32>
    %193 = vector.extract_strided_slice %189 {offsets = [0, 64], sizes = [2, 64], strides = [1, 1]} : vector<2x192xf32> to vector<2x64xf32>
    %194 = vector.extract_strided_slice %189 {offsets = [0, 128], sizes = [2, 64], strides = [1, 1]} : vector<2x192xf32> to vector<2x64xf32>
    %195 = arith.mulf %193, %169 : vector<2x64xf32>
    %196 = arith.mulf %192, %191 : vector<2x64xf32>
    %197 = arith.addf %195, %196 : vector<2x64xf32>
    %198 = math.tanh %197 : vector<2x64xf32>
    %199 = arith.mulf %194, %198 : vector<2x64xf32>
    %200 = vector.broadcast %8 : vector<1x64xf32> to vector<2x64xf32>
    %201 = arith.mulf %199, %200 : vector<2x64xf32>
    %cst_44 = arith.constant dense<0.000000e+00> : vector<2xf32>
    %202 = vector.multi_reduction <add>, %201, %cst_44 [1] : vector<2x64xf32> to vector<2xf32>
    %203 = vector.shape_cast %202 : vector<2xf32> to vector<2x1xf32>
    %c6_i32 = arith.constant 6 : i32
    %204 = vector.broadcast %c6_i32 : i32 to vector<2x8xi32>
    %205 = arith.cmpi eq, %9, %204 : vector<2x8xi32>
    %206 = vector.shape_cast %203 : vector<2x1xf32> to vector<2x1xf32>
    %207 = vector.broadcast %206 : vector<2x1xf32> to vector<2x8xf32>
    %208 = arith.select %205, %207, %180 : vector<2x8xi1>, vector<2x8xf32>
    %c14 = arith.constant 14 : index
    %c0_45 = arith.constant 0 : index
    %209 = vector.load %arg11[%c14, %c0_45] : memref<16x256xf32, #tpu.memory_space<vmem>>, vector<2x256xf32>
    %cst_46 = arith.constant dense<0.000000e+00> : vector<2x256xf32>
    %210 = tpu.matmul %199, %7, %cst_46 {dimension_numbers = #tpu.dot_dimension_numbers<[1], [0], [0], [1], [0, 0, 1, 1], [], []>} : vector<2x64xf32>, vector<64x256xf32>, vector<2x256xf32> -> vector<2x256xf32>
    %211 = arith.addf %209, %210 : vector<2x256xf32>
    %212 = vector.extract_strided_slice %211 {offsets = [0, 0], sizes = [2, 192], strides = [1, 1]} : vector<2x256xf32> to vector<2x192xf32>
    %213 = arith.negf %212 : vector<2x192xf32>
    %214 = math.exp %213 : vector<2x192xf32>
    %cst_47 = arith.constant 1.000000e+00 : f32
    %215 = vector.broadcast %cst_47 : f32 to vector<2x192xf32>
    %216 = arith.addf %215, %214 : vector<2x192xf32>
    %217 = arith.divf %215, %216 : vector<2x192xf32>
    %218 = vector.extract_strided_slice %211 {offsets = [0, 192], sizes = [2, 64], strides = [1, 1]} : vector<2x256xf32> to vector<2x64xf32>
    %219 = math.tanh %218 : vector<2x64xf32>
    %220 = vector.extract_strided_slice %217 {offsets = [0, 0], sizes = [2, 64], strides = [1, 1]} : vector<2x192xf32> to vector<2x64xf32>
    %221 = vector.extract_strided_slice %217 {offsets = [0, 64], sizes = [2, 64], strides = [1, 1]} : vector<2x192xf32> to vector<2x64xf32>
    %222 = vector.extract_strided_slice %217 {offsets = [0, 128], sizes = [2, 64], strides = [1, 1]} : vector<2x192xf32> to vector<2x64xf32>
    %223 = arith.mulf %221, %197 : vector<2x64xf32>
    %224 = arith.mulf %220, %219 : vector<2x64xf32>
    %225 = arith.addf %223, %224 : vector<2x64xf32>
    %226 = math.tanh %225 : vector<2x64xf32>
    %227 = arith.mulf %222, %226 : vector<2x64xf32>
    %228 = vector.broadcast %8 : vector<1x64xf32> to vector<2x64xf32>
    %229 = arith.mulf %227, %228 : vector<2x64xf32>
    %cst_48 = arith.constant dense<0.000000e+00> : vector<2xf32>
    %230 = vector.multi_reduction <add>, %229, %cst_48 [1] : vector<2x64xf32> to vector<2xf32>
    %231 = vector.shape_cast %230 : vector<2xf32> to vector<2x1xf32>
    %c7_i32 = arith.constant 7 : i32
    %232 = vector.broadcast %c7_i32 : i32 to vector<2x8xi32>
    %233 = arith.cmpi eq, %9, %232 : vector<2x8xi32>
    %234 = vector.shape_cast %231 : vector<2x1xf32> to vector<2x1xf32>
    %235 = vector.broadcast %234 : vector<2x1xf32> to vector<2x8xf32>
    %236 = arith.select %233, %235, %208 : vector<2x8xi1>, vector<2x8xf32>
    %c0_49 = arith.constant 0 : index
    %c0_50 = arith.constant 0 : index
    %237 = memref.load %arg7[%c0_49, %c0_50] : memref<1x1xf32, #tpu.memory_space<smem>>
    %238 = vector.broadcast %237 : f32 to vector<2x8xf32>
    %239 = arith.addf %236, %238 : vector<2x8xf32>
    %c0_51 = arith.constant 0 : index
    %c0_52 = arith.constant 0 : index
    %240 = vector.load %arg8[%c0_51, %c0_52] : memref<2x8xf32, #tpu.memory_space<vmem>>, vector<2x8xf32>
    tpu.vector_store %arg8[%c0_51, %c0_52], %239 {strides = array<i32>} : memref<2x8xf32, #tpu.memory_space<vmem>>, vector<2x8xf32>,
    %c0_53 = arith.constant 0 : index
    %c0_54 = arith.constant 0 : index
    %241 = vector.load %arg9[%c0_53, %c0_54] : memref<2x64xf32, #tpu.memory_space<vmem>>, vector<2x64xf32>
    tpu.vector_store %arg9[%c0_53, %c0_54], %227 {strides = array<i32>} : memref<2x64xf32, #tpu.memory_space<vmem>>, vector<2x64xf32>,
    %c0_55 = arith.constant 0 : index
    %c0_56 = arith.constant 0 : index
    %242 = vector.load %arg10[%c0_55, %c0_56] : memref<2x64xf32, #tpu.memory_space<vmem>>, vector<2x64xf32>
    tpu.vector_store %arg10[%c0_55, %c0_56], %225 {strides = array<i32>} : memref<2x64xf32, #tpu.memory_space<vmem>>, vector<2x64xf32>,
    return
  }
}

</mosaic_0001>

<llo_original>
// kernel: rnn_stock_forward.1
$region0: #{rnn_stock_forward.1}
  #allocation0 [shape = 'u32[]', space=smem, size = 0x4, offset = 0x4, fixed_abs, tag = 'smem constant byte address 0x4 - core index']
  #allocation1 [shape = 'u32[144,128]{1,0:T(1,128)}', space=vmem, size = 0x12000, scoped, tag = 'internal scratch']
  #allocation2 [shape = 'f32[16,256]{1,0:T(8,128)}', space=vmem, size = 0x4000, scoped, tag = 'scratch operand']
  #allocation3 [shape = 'f32[1,1]{1,0:T(1,128)S(6)}', space=smem, size = 0x200, scoped, tag = 'scoped memory for rnn_stock_forward.1']
  %s0 = inlined_call_operand.vmem [shape: f32[16,16], index: 0, kind: input, shape index: {}]
  %s1 = inlined_call_operand.vmem [shape: f32[16,256], index: 1, kind: input, shape index: {}]
  %s2 = inlined_call_operand.vmem [shape: f32[1,256], index: 2, kind: input, shape index: {}]
  %s3 = inlined_call_operand.vmem [shape: f32[2,64], index: 3, kind: input, shape index: {}]
  %s4 = inlined_call_operand.vmem [shape: f32[2,64], index: 4, kind: input, shape index: {}]
  %s5 = inlined_call_operand.hbm [shape: f32[64,256], index: 5, kind: input, shape index: {}]
  %s6 = inlined_call_operand.vmem [shape: f32[1,64], index: 6, kind: input, shape index: {}]
  %s7 = inlined_call_operand.<no memory space> [shape: f32[1,1], index: 7, kind: input, shape index: {}]
  %s8 = inlined_call_operand.hbm [shape: f32[2,8], index: 8, kind: output, shape index: {0}]
  %s9 = inlined_call_operand.hbm [shape: f32[2,64], index: 9, kind: output, shape index: {1}]
  %s10 = inlined_call_operand.hbm [shape: f32[2,64], index: 10, kind: output, shape index: {2}]
  %11 = xla_tuple %s8, %s9, %s10
  %s12 = sld [smem:[#allocation0]]
  $region62: #{rnn_stock_forward.1} parent=0
    _
  %s14 = ssub.s32 1, %s12
  %s15 = scalar_select 0, %s14, %s12
  %16 = sst [smem:[#allocation3]] %s7
  $region1: #{rnn_stock_forward.1} parent=0
    #allocation4 [shape = 'u8[65536]{0}', space=vmem, size = 0x10000, scoped, tag = 'input window, operand 5, single buffered']
    #allocation5 [shape = 's32[1]{0}', space=sflag, size = 0x4, scoped, tag = 'scoped memory for rnn_stock_forward.1']
    #allocation6 [shape = 's32[1]{0}', space=sflag, size = 0x4, scoped, tag = 'scoped memory for rnn_stock_forward.1']
    #allocation7 [shape = 'u8[1024]{0}', space=vmem, size = 0x400, scoped, tag = 'output window, operand 0, single buffered']
    #allocation8 [shape = 'u8[1024]{0}', space=vmem, size = 0x400, scoped, tag = 'output window, operand 1, single buffered']
    #allocation9 [shape = 's32[1]{0}', space=sflag, size = 0x4, scoped, tag = 'scoped memory for rnn_stock_forward.1']
    #allocation10 [shape = 'u8[1024]{0}', space=vmem, size = 0x400, scoped, tag = 'output window, operand 2, single buffered']
    %17 = vsyncpa [#allocation5], 0
    %18 = vsyncpa [#allocation6], 0
    %19 = vsyncpa [#allocation9], 0
    // Predicated region
    $region2: #{rnn_stock_forward.1} parent=1 // pred_check
      _
    $region3: #{rnn_stock_forward.1} parent=1 // pred_check_branch
      %21 = sbr.rel (0) target = $region5
    $region4: #{rnn_stock_forward.1} parent=1 // pred_region
      _
    $region5: #{rnn_stock_forward.1} parent=1 // pred_fallthru
      _
    // Predicated region
    $region6: #{rnn_stock_forward.1} parent=1 // pred_check
      _
    $region7: #{rnn_stock_forward.1} parent=1 // pred_check_branch
      %23 = sbr.rel (0) target = $region9
    $region8: #{rnn_stock_forward.1} parent=1 // pred_region
      _
    $region9: #{rnn_stock_forward.1} parent=1 // pred_fallthru
      _
    // Predicated region
    $region10: #{rnn_stock_forward.1} parent=1 // pred_check
      _
    $region11: #{rnn_stock_forward.1} parent=1 // pred_check_branch
      %25 = sbr.rel (0) target = $region13
    $region12: #{rnn_stock_forward.1} parent=1 // pred_region
      _
    $region13: #{rnn_stock_forward.1} parent=1 // pred_fallthru
      _
    // Predicated region
    $region14: #{rnn_stock_forward.1} parent=1 // pred_check
      _
    $region15: #{rnn_stock_forward.1} parent=1 // pred_check_branch
      %27 = sbr.rel (0) target = $region17
    $region16: #{rnn_stock_forward.1} parent=1 // pred_region
      _
    $region17: #{rnn_stock_forward.1} parent=1 // pred_fallthru
      _
    // Predicated region
    $region18: #{rnn_stock_forward.1} parent=1 // pred_check
      _
    $region19: #{rnn_stock_forward.1} parent=1 // pred_check_branch
      %29 = sbr.rel (0) target = $region21
    $region20: #{rnn_stock_forward.1} parent=1 // pred_region
      _
    $region21: #{rnn_stock_forward.1} parent=1 // pred_fallthru
      _
    // Predicated region
    $region22: #{rnn_stock_forward.1} parent=1 // pred_check
      _
    $region23: #{rnn_stock_forward.1} parent=1 // pred_check_branch
      %31 = sbr.rel (0) target = $region25
    $region24: #{rnn_stock_forward.1} parent=1 // pred_region
      %s33 = ssub.s32 2048, 2048
      %34 = vsyncadd [#allocation5], %s33
      %s35 = sshll.u32 [#allocation4], 4
      %s36 = int_to_ptr.vmem [resolvable:$true] %s35
      %41 = dma.hbm_to_vmem [thread:$0]  %s5, 2048, %s36, [#allocation5], 256, 256, 16
    $region25: #{rnn_stock_forward.1} parent=1 // pred_fallthru
      _
    // Predicated region
    $region26: #{rnn_stock_forward.1} parent=1 // pred_check
      _
    $region27: #{rnn_stock_forward.1} parent=1 // pred_check_branch
      %43 = sbr.rel (0) target = $region29
    $region28: #{rnn_stock_forward.1} parent=1 // pred_region
      _
    $region29: #{rnn_stock_forward.1} parent=1 // pred_fallthru
      _
    // Predicated region
    $region30: #{rnn_stock_forward.1} parent=1 // pred_check
      _
    $region31: #{rnn_stock_forward.1} parent=1 // pred_check_branch
      %45 = sbr.rel (0) target = $region33
    $region32: #{rnn_stock_forward.1} parent=1 // pred_region
      _
    $region33: #{rnn_stock_forward.1} parent=1 // pred_fallthru
      _
    // Predicated region
    $region34: #{rnn_stock_forward.1} parent=1 // pred_check
      _
    $region35: #{rnn_stock_forward.1} parent=1 // pred_check_branch
      %47 = sbr.rel (0) target = $region37
    $region36: #{rnn_stock_forward.1} parent=1 // pred_region
      %48 = dma.done [#allocation5], 2048
    $region37: #{rnn_stock_forward.1} parent=1 // pred_fallthru
      _
    %v49 = vld [vmem:[%s0] sm:$0xff]
    %v50 = vld [vmem:[%s0 + $0x8] sm:$0xff]
    %v51 = vld [vmem:[%s1] sm:$0xff]
    %v52 = vld [vmem:[%s1 + $0x8] sm:$0xff]
    %v53 = vld [vmem:[%s1 + $0x10] sm:$0xff]
    %v54 = vld [vmem:[%s1 + $0x18] sm:$0xff]
    %v55 = vld [vmem:[%s2] sm:$0x3]
    %v57 = vlaneseq
    %v58 = vshrl.u32 %v57, 7
    %v59 = vsub.s32 0, %v58
    %v60 = vrot.slane %v55, %v59
    %v61 = vlaneseq
    %v62 = vshrl.u32 %v61, 7
    %v63 = vsub.s32 1, %v62
    %v64 = vrot.slane %v55, %v63
    %vm67 = vcmask 130048
    %v69 = vsel %vm67, %v49, 0
    %v72 = vsel %vm67, %v50, 0
    %74 = vmatprep.subr.mxu0 0.0
    %75 = vmatpush1.msra.mxu0 0.0
    %76 = vmatprep.subr.mxu0 0.0
    %77 = vmatpush1.msra.mxu0 0.0
    %78 = vmatprep.subr.mxu0 0.0
    %79 = vmatpush1.msra.mxu0 0.0
    %80 = vmatprep.subr.mxu0 0.0
    %81 = vmatpush1.msra.mxu0 0.0
    %82 = vmatprep.subr.mxu0 0.0
    %83 = vmatpush1.msra.mxu0 0.0
    %84 = vmatprep.subr.mxu0 0.0
    %85 = vmatpush1.msra.mxu0 0.0
    %86 = vmatprep.subr.mxu0 0.0
    %87 = vmatpush1.msra.mxu0 0.0
    %88 = vmatprep.subr.mxu0 0.0
    %89 = vmatpush1.msra.mxu0 0.0
    %90 = vmatprep.subr.mxu0 0.0
    %91 = vmatpush1.msra.mxu0 0.0
    %92 = vmatprep.subr.mxu0 0.0
    %93 = vmatpush1.msra.mxu0 0.0
    %94 = vmatprep.subr.mxu0 0.0
    %95 = vmatpush1.msra.mxu0 0.0
    %96 = vmatprep.subr.mxu0 0.0
    %97 = vmatpush1.msra.mxu0 0.0
    %98 = vmatprep.subr.mxu0 0.0
    %99 = vmatpush1.msra.mxu0 0.0
    %100 = vmatprep.subr.mxu0 0.0
    %101 = vmatpush1.msra.mxu0 0.0
    %102 = vmatprep.subr.mxu0 %v54
    %103 = vmatpush1.msra.mxu0 %v53
    %104 = vmatprep.subr.mxu0 %v52
    %105 = vmatpush1.msra.mxu0 %v51
    %106 = vmatprep.subr.mxu0 0.0
    %107 = vmatpush2.msra.mxu0 0.0
    %108 = vmatprep.subr.mxu0 0.0
    %109 = vmatpush2.msra.mxu0 0.0
    %110 = vmatprep.subr.mxu0 0.0
    %111 = vmatpush2.msra.mxu0 0.0
    %112 = vmatprep.subr.mxu0 0.0
    %113 = vmatpush2.msra.mxu0 0.0
    %114 = vmatprep.subr.mxu0 0.0
    %115 = vmatpush2.msra.mxu0 0.0
    %116 = vmatprep.subr.mxu0 0.0
    %117 = vmatpush2.msra.mxu0 0.0
    %118 = vmatprep.subr.mxu0 0.0
    %119 = vmatpush2.msra.mxu0 0.0
    %120 = vmatprep.subr.mxu0 0.0
    %121 = vmatpush2.msra.mxu0 0.0
    %122 = vmatprep.subr.mxu0 0.0
    %123 = vmatpush2.msra.mxu0 0.0
    %124 = vmatprep.subr.mxu0 0.0
    %125 = vmatpush2.msra.mxu0 0.0
    %126 = vmatprep.subr.mxu0 0.0
    %127 = vmatpush2.msra.mxu0 0.0
    %128 = vmatprep.subr.mxu0 0.0
    %129 = vmatpush2.msra.mxu0 0.0
    %130 = vmatprep.subr.mxu0 0.0
    %131 = vmatpush2.msra.mxu0 0.0
    %132 = vmatprep.subr.mxu0 0.0
    %133 = vmatpush2.msra.mxu0 0.0
    %134 = vmatprep.subr.mxu0 0.0
    %135 = vmatpush2.msra.mxu0 0.0
    %136 = vmatprep.subr.mxu0 0.0
    %137 = vmatpush2.msra.mxu0 0.0
    %138 = vmatprep.mubr.f32.mxu0 0.0
    %139 = vmatmul.mubr.f32.gmra.mxu0 %v69
    %v140 = vpop.f32.mrf.mxu0
    %v141 = vadd.f32 %v60, %v140
    %v142 = vpop.f32.mrf.mxu0
    %v143 = vadd.f32 %v64, %v142
    %144 = vmatprep.mubr.f32.mxu0 0.0
    %145 = vmatmul.mubr.f32.gmra.mxu0 %v72
    %v146 = vpop.f32.mrf.mxu0
    %v147 = vadd.f32 %v60, %v146
    %v148 = vpop.f32.mrf.mxu0
    %v149 = vadd.f32 %v64, %v148
    %150 = vdwg.mxu0
    %151 = vst [vmem:[#allocation2] sm:$0xff] %v141
    %152 = vst [vmem:[#allocation2 + $0x8] sm:$0xff] %v143
    %153 = vst [vmem:[#allocation2 + $0x10] sm:$0xff] %v147
    %154 = vst [vmem:[#allocation2 + $0x18] sm:$0xff] %v149
    %v155 = vld [vmem:[#allocation4] sm:$0xff]
    %v156 = vld [vmem:[#allocation4 + $0x8] sm:$0xff]
    %v157 = vld [vmem:[#allocation4 + $0x10] sm:$0xff]
    %v158 = vld [vmem:[#allocation4 + $0x18] sm:$0xff]
    %v159 = vld [vmem:[#allocation4 + $0x20] sm:$0xff]
    %v160 = vld [vmem:[#allocation4 + $0x28] sm:$0xff]
    %v161 = vld [vmem:[#allocation4 + $0x30] sm:$0xff]
    %v162 = vld [vmem:[#allocation4 + $0x38] sm:$0xff]
    %v163 = vld [vmem:[#allocation4 + $0x40] sm:$0xff]
    %v164 = vld [vmem:[#allocation4 + $0x48] sm:$0xff]
    %v165 = vld [vmem:[#allocation4 + $0x50] sm:$0xff]
    %v166 = vld [vmem:[#allocation4 + $0x58] sm:$0xff]
    %v167 = vld [vmem:[#allocation4 + $0x60] sm:$0xff]
    %v168 = vld [vmem:[#allocation4 + $0x68] sm:$0xff]
    %v169 = vld [vmem:[#allocation4 + $0x70] sm:$0xff]
    %v170 = vld [vmem:[#allocation4 + $0x78] sm:$0xff]
    %v171 = vld [vmem:[%s6] sm:$0x1]
    %v172 = vlaneseq
    %v173 = vand.u32 %v172, 127
    %v174 = vld [vmem:[%s3] sm:$0x3]
    %v175 = vld [vmem:[%s4] sm:$0x3]
    %v176 = vld [vmem:[#allocation2] sm:$0x3]
    %v177 = vld [vmem:[#allocation2 + $0x8] sm:$0x3]
    %vm178 = vcmask 523264
    %v180 = vsel %vm178, %v174, 0
    %182 = vmatprep.subr.mxu0 0.0
    %183 = vmatpush1.msra.mxu0 0.0
    %184 = vmatprep.subr.mxu0 0.0
    %185 = vmatpush1.msra.mxu0 0.0
    %186 = vmatprep.subr.mxu0 0.0
    %187 = vmatpush1.msra.mxu0 0.0
    %188 = vmatprep.subr.mxu0 0.0
    %189 = vmatpush1.msra.mxu0 0.0
    %190 = vmatprep.subr.mxu0 0.0
    %191 = vmatpush1.msra.mxu0 0.0
    %192 = vmatprep.subr.mxu0 0.0
    %193 = vmatpush1.msra.mxu0 0.0
    %194 = vmatprep.subr.mxu0 0.0
    %195 = vmatpush1.msra.mxu0 0.0
    %196 = vmatprep.subr.mxu0 0.0
    %197 = vmatpush1.msra.mxu0 0.0
    %198 = vmatprep.subr.mxu0 %v170
    %199 = vmatpush1.msra.mxu0 %v169
    %200 = vmatprep.subr.mxu0 %v168
    %201 = vmatpush1.msra.mxu0 %v167
    %202 = vmatprep.subr.mxu0 %v166
    %203 = vmatpush1.msra.mxu0 %v165
    %204 = vmatprep.subr.mxu0 %v164
    %205 = vmatpush1.msra.mxu0 %v163
    %206 = vmatprep.subr.mxu0 %v162
    %207 = vmatpush1.msra.mxu0 %v161
    %208 = vmatprep.subr.mxu0 %v160
    %209 = vmatpush1.msra.mxu0 %v159
    %210 = vmatprep.subr.mxu0 %v158
    %211 = vmatpush1.msra.mxu0 %v157
    %212 = vmatprep.subr.mxu0 %v156
    %213 = vmatpush1.msra.mxu0 %v155
    %214 = vmatprep.subr.mxu0 0.0
    %215 = vmatpush2.msra.mxu0 0.0
    %216 = vmatprep.subr.mxu0 0.0
    %217 = vmatpush2.msra.mxu0 0.0
    %218 = vmatprep.subr.mxu0 0.0
    %219 = vmatpush2.msra.mxu0 0.0
    %220 = vmatprep.subr.mxu0 0.0
    %221 = vmatpush2.msra.mxu0 0.0
    %222 = vmatprep.subr.mxu0 0.0
    %223 = vmatpush2.msra.mxu0 0.0
    %224 = vmatprep.subr.mxu0 0.0
    %225 = vmatpush2.msra.mxu0 0.0
    %226 = vmatprep.subr.mxu0 0.0
    %227 = vmatpush2.msra.mxu0 0.0
    %228 = vmatprep.subr.mxu0 0.0
    %229 = vmatpush2.msra.mxu0 0.0
    %230 = vmatprep.subr.mxu0 0.0
    %231 = vmatpush2.msra.mxu0 0.0
    %232 = vmatprep.subr.mxu0 0.0
    %233 = vmatpush2.msra.mxu0 0.0
    %234 = vmatprep.subr.mxu0 0.0
    %235 = vmatpush2.msra.mxu0 0.0
    %236 = vmatprep.subr.mxu0 0.0
    %237 = vmatpush2.msra.mxu0 0.0
    %238 = vmatprep.subr.mxu0 0.0
    %239 = vmatpush2.msra.mxu0 0.0
    %240 = vmatprep.subr.mxu0 0.0
    %241 = vmatpush2.msra.mxu0 0.0
    %242 = vmatprep.subr.mxu0 0.0
    %243 = vmatpush2.msra.mxu0 0.0
    %244 = vmatprep.subr.mxu0 0.0
    %245 = vmatpush2.msra.mxu0 0.0
    %246 = vmatprep.mubr.f32.mxu0 0.0
    %247 = vmatmul.mubr.f32.gmra.mxu0 %v180
    %v248 = vpop.f32.mrf.mxu0
    %v249 = vadd.f32 0.0, %v248
    %v250 = vpop.f32.mrf.mxu0
    %v251 = vadd.f32 0.0, %v250
    %252 = vdwg.mxu0
    %v253 = vadd.f32 %v176, %v249
    %v254 = vadd.f32 %v177, %v251
    %v255 = vxor.u32 %v253, 2147483648
    %v256 = vxor.u32 %v254, 2147483648
    %v257 = vmul.f32 %v255, 1.442695
    %v258 = vpow.pop %v257
    %v259 = vmul.f32 %v256, 1.442695
    %v260 = vpow.pop %v259
    %v261 = vadd.f32 %v258, 1.0
    %v262 = vadd.f32 %v260, 1.0
    %v263 = vrcp.pop %v261
    %v264 = vmul.f32 1.0, %v263
    %v265 = vrcp.pop %v262
    %v266 = vmul.f32 1.0, %v265
    %v267 = vtanh.pop %v254
    %269 = vrot.lane.b32.xlu0 %v175, 64
    %v270 = vpop.permute.xlu0 %269
    %v272 = vmul.f32 %v264, %v270
    %274 = vrot.lane.b32.xlu0 %v267, 64
    %v275 = vpop.permute.xlu0 %274
    %v277 = vmul.f32 %v264, %v275
    %279 = vrot.lane.b32.xlu0 %v277, 64
    %v280 = vpop.permute.xlu0 %279
    %v282 = vadd.f32 %v272, %v280
    %v283 = vtanh.pop %v282
    %285 = vrot.lane.b32.xlu0 %v283, 64
    %v286 = vpop.permute.xlu0 %285
    %v288 = vmul.f32 %v266, %v286
    %v290 = vlaneseq
    %v291 = vshrl.u32 %v290, 7
    %v292 = vsub.s32 0, %v291
    %v293 = vrot.slane %v171, %v292
    %v295 = vmul.f32 %v288, %v293
    %vm296 = vcmask 517120
    %v297 = vsel %vm296, %v295, 0.0
    %298 = vadd.xlane.f32.xlu0 %v297
    %v299 = vpop.xlane.xlu0 %298
    %vm300 = vcmp.eq.s32.totalorder %v173, 0
    %v301 = vsel %vm300, %v299, 0.0
    %v302 = vld [vmem:[#allocation2] sm:$0xc]
    %v303 = vld [vmem:[#allocation2 + $0x8] sm:$0xc]
    %v305 = vsel %vm178, %v288, 0
    %307 = vmatprep.subr.mxu0 0.0
    %308 = vmatpush1.msra.mxu0 0.0
    %309 = vmatprep.subr.mxu0 0.0
    %310 = vmatpush1.msra.mxu0 0.0
    %311 = vmatprep.subr.mxu0 0.0
    %312 = vmatpush1.msra.mxu0 0.0
    %313 = vmatprep.subr.mxu0 0.0
    %314 = vmatpush1.msra.mxu0 0.0
    %315 = vmatprep.subr.mxu0 0.0
    %316 = vmatpush1.msra.mxu0 0.0
    %317 = vmatprep.subr.mxu0 0.0
    %318 = vmatpush1.msra.mxu0 0.0
    %319 = vmatprep.subr.mxu0 0.0
    %320 = vmatpush1.msra.mxu0 0.0
    %321 = vmatprep.subr.mxu0 0.0
    %322 = vmatpush1.msra.mxu0 0.0
    %323 = vmatprep.subr.mxu0 %v170
    %324 = vmatpush1.msra.mxu0 %v169
    %325 = vmatprep.subr.mxu0 %v168
    %326 = vmatpush1.msra.mxu0 %v167
    %327 = vmatprep.subr.mxu0 %v166
    %328 = vmatpush1.msra.mxu0 %v165
    %329 = vmatprep.subr.mxu0 %v164
    %330 = vmatpush1.msra.mxu0 %v163
    %331 = vmatprep.subr.mxu0 %v162
    %332 = vmatpush1.msra.mxu0 %v161
    %333 = vmatprep.subr.mxu0 %v160
    %334 = vmatpush1.msra.mxu0 %v159
    %335 = vmatprep.subr.mxu0 %v158
    %336 = vmatpush1.msra.mxu0 %v157
    %337 = vmatprep.subr.mxu0 %v156
    %338 = vmatpush1.msra.mxu0 %v155
    %339 = vmatprep.subr.mxu0 0.0
    %340 = vmatpush2.msra.mxu0 0.0
    %341 = vmatprep.subr.mxu0 0.0
    %342 = vmatpush2.msra.mxu0 0.0
    %343 = vmatprep.subr.mxu0 0.0
    %344 = vmatpush2.msra.mxu0 0.0
    %345 = vmatprep.subr.mxu0 0.0
    %346 = vmatpush2.msra.mxu0 0.0
    %347 = vmatprep.subr.mxu0 0.0
    %348 = vmatpush2.msra.mxu0 0.0
    %349 = vmatprep.subr.mxu0 0.0
    %350 = vmatpush2.msra.mxu0 0.0
    %351 = vmatprep.subr.mxu0 0.0
    %352 = vmatpush2.msra.mxu0 0.0
    %353 = vmatprep.subr.mxu0 0.0
    %354 = vmatpush2.msra.mxu0 0.0
    %355 = vmatprep.subr.mxu0 0.0
    %356 = vmatpush2.msra.mxu0 0.0
    %357 = vmatprep.subr.mxu0 0.0
    %358 = vmatpush2.msra.mxu0 0.0
    %359 = vmatprep.subr.mxu0 0.0
    %360 = vmatpush2.msra.mxu0 0.0
    %361 = vmatprep.subr.mxu0 0.0
    %362 = vmatpush2.msra.mxu0 0.0
    %363 = vmatprep.subr.mxu0 0.0
    %364 = vmatpush2.msra.mxu0 0.0
    %365 = vmatprep.subr.mxu0 0.0
    %366 = vmatpush2.msra.mxu0 0.0
    %367 = vmatprep.subr.mxu0 0.0
    %368 = vmatpush2.msra.mxu0 0.0
    %369 = vmatprep.subr.mxu0 0.0
    %370 = vmatpush2.msra.mxu0 0.0
    %371 = vmatprep.mubr.f32.mxu0 0.0
    %372 = vmatmul.mubr.f32.gmra.mxu0 %v305
    %v373 = vpop.f32.mrf.mxu0
    %v374 = vadd.f32 0.0, %v373
    %v375 = vpop.f32.mrf.mxu0
    %v376 = vadd.f32 0.0, %v375
    %377 = vdwg.mxu0
    %v380 = vrot.slane %v374, 6
    %v381 = vrot.slane %v376, 6
    %v384 = vadd.f32 %v302, %v380
    %v385 = vadd.f32 %v303, %v381
    %v386 = vxor.u32 %v384, 2147483648
    %v387 = vxor.u32 %v385, 2147483648
    %v388 = vmul.f32 %v386, 1.442695
    %v389 = vpow.pop %v388
    %v390 = vmul.f32 %v387, 1.442695
    %v391 = vpow.pop %v390
    %v392 = vadd.f32 %v389, 1.0
    %v393 = vadd.f32 %v391, 1.0
    %v394 = vrcp.pop %v392
    %v395 = vmul.f32 1.0, %v394
    %v396 = vrcp.pop %v393
    %v397 = vmul.f32 1.0, %v396
    %v398 = vtanh.pop %v385
    %v400 = vrot.slane %v282, 6
    %v402 = vmul.f32 %v395, %v400
    %404 = vrot.lane.b32.xlu0 %v398, 64
    %v405 = vpop.permute.xlu0 %404
    %v407 = vmul.f32 %v395, %v405
    %409 = vrot.lane.b32.xlu0 %v407, 64
    %v410 = vpop.permute.xlu0 %409
    %v412 = vadd.f32 %v402, %v410
    %v413 = vtanh.pop %v412
    %415 = vrot.lane.b32.xlu0 %v413, 64
    %v416 = vpop.permute.xlu0 %415
    %v418 = vmul.f32 %v397, %v416
    %v419 = vmul.f32 %v418, %v293
    %vm420 = vcmask 519170
    %v421 = vsel %vm420, %v419, 0.0
    %422 = vadd.xlane.f32.xlu0 %v421
    %v423 = vpop.xlane.xlu0 %422
    %vm424 = vcmp.eq.s32.totalorder %v173, 1
    %v426 = vrot.slane %v301, 6
    %v428 = vsel %vm424, %v423, %v426
    %v429 = vld [vmem:[#allocation2] sm:$0x30]
    %v430 = vld [vmem:[#allocation2 + $0x8] sm:$0x30]
    %v432 = vrot.slane %v418, 2
    %v433 = vsel %vm178, %v432, 0
    %435 = vmatprep.subr.mxu0 0.0
    %436 = vmatpush1.msra.mxu0 0.0
    %437 = vmatprep.subr.mxu0 0.0
    %438 = vmatpush1.msra.mxu0 0.0
    %439 = vmatprep.subr.mxu0 0.0
    %440 = vmatpush1.msra.mxu0 0.0
    %441 = vmatprep.subr.mxu0 0.0
    %442 = vmatpush1.msra.mxu0 0.0
    %443 = vmatprep.subr.mxu0 0.0
    %444 = vmatpush1.msra.mxu0 0.0
    %445 = vmatprep.subr.mxu0 0.0
    %446 = vmatpush1.msra.mxu0 0.0
    %447 = vmatprep.subr.mxu0 0.0
    %448 = vmatpush1.msra.mxu0 0.0
    %449 = vmatprep.subr.mxu0 0.0
    %450 = vmatpush1.msra.mxu0 0.0
    %451 = vmatprep.subr.mxu0 %v170
    %452 = vmatpush1.msra.mxu0 %v169
    %453 = vmatprep.subr.mxu0 %v168
    %454 = vmatpush1.msra.mxu0 %v167
    %455 = vmatprep.subr.mxu0 %v166
    %456 = vmatpush1.msra.mxu0 %v165
    %457 = vmatprep.subr.mxu0 %v164
    %458 = vmatpush1.msra.mxu0 %v163
    %459 = vmatprep.subr.mxu0 %v162
    %460 = vmatpush1.msra.mxu0 %v161
    %461 = vmatprep.subr.mxu0 %v160
    %462 = vmatpush1.msra.mxu0 %v159
    %463 = vmatprep.subr.mxu0 %v158
    %464 = vmatpush1.msra.mxu0 %v157
    %465 = vmatprep.subr.mxu0 %v156
    %466 = vmatpush1.msra.mxu0 %v155
    %467 = vmatprep.subr.mxu0 0.0
    %468 = vmatpush2.msra.mxu0 0.0
    %469 = vmatprep.subr.mxu0 0.0
    %470 = vmatpush2.msra.mxu0 0.0
    %471 = vmatprep.subr.mxu0 0.0
    %472 = vmatpush2.msra.mxu0 0.0
    %473 = vmatprep.subr.mxu0 0.0
    %474 = vmatpush2.msra.mxu0 0.0
    %475 = vmatprep.subr.mxu0 0.0
    %476 = vmatpush2.msra.mxu0 0.0
    %477 = vmatprep.subr.mxu0 0.0
    %478 = vmatpush2.msra.mxu0 0.0
    %479 = vmatprep.subr.mxu0 0.0
    %480 = vmatpush2.msra.mxu0 0.0
    %481 = vmatprep.subr.mxu0 0.0
    %482 = vmatpush2.msra.mxu0 0.0
    %483 = vmatprep.subr.mxu0 0.0
    %484 = vmatpush2.msra.mxu0 0.0
    %485 = vmatprep.subr.mxu0 0.0
    %486 = vmatpush2.msra.mxu0 0.0
    %487 = vmatprep.subr.mxu0 0.0
    %488 = vmatpush2.msra.mxu0 0.0
    %489 = vmatprep.subr.mxu0 0.0
    %490 = vmatpush2.msra.mxu0 0.0
    %491 = vmatprep.subr.mxu0 0.0
    %492 = vmatpush2.msra.mxu0 0.0
    %493 = vmatprep.subr.mxu0 0.0
    %494 = vmatpush2.msra.mxu0 0.0
    %495 = vmatprep.subr.mxu0 0.0
    %496 = vmatpush2.msra.mxu0 0.0
    %497 = vmatprep.subr.mxu0 0.0
    %498 = vmatpush2.msra.mxu0 0.0
    %499 = vmatprep.mubr.f32.mxu0 0.0
    %500 = vmatmul.mubr.f32.gmra.mxu0 %v433
    %v501 = vpop.f32.mrf.mxu0
    %v502 = vadd.f32 0.0, %v501
    %v503 = vpop.f32.mrf.mxu0
    %v504 = vadd.f32 0.0, %v503
    %505 = vdwg.mxu0
    %v508 = vrot.slane %v502, 4
    %v509 = vrot.slane %v504, 4
    %v512 = vadd.f32 %v429, %v508
    %v513 = vadd.f32 %v430, %v509
    %v514 = vxor.u32 %v512, 2147483648
    %v515 = vxor.u32 %v513, 2147483648
    %v516 = vmul.f32 %v514, 1.442695
    %v517 = vpow.pop %v516
    %v518 = vmul.f32 %v515, 1.442695
    %v519 = vpow.pop %v518
    %v520 = vadd.f32 %v517, 1.0
    %v521 = vadd.f32 %v519, 1.0
    %v522 = vrcp.pop %v520
    %v523 = vmul.f32 1.0, %v522
    %v524 = vrcp.pop %v521
    %v525 = vmul.f32 1.0, %v524
    %v526 = vtanh.pop %v513
    %v528 = vrot.slane %v412, 6
    %v530 = vmul.f32 %v523, %v528
    %532 = vrot.lane.b32.xlu0 %v526, 64
    %v533 = vpop.permute.xlu0 %532
    %v535 = vmul.f32 %v523, %v533
    %537 = vrot.lane.b32.xlu0 %v535, 64
    %v538 = vpop.permute.xlu0 %537
    %v540 = vadd.f32 %v530, %v538
    %v541 = vtanh.pop %v540
    %543 = vrot.lane.b32.xlu0 %v541, 64
    %v544 = vpop.permute.xlu0 %543
    %v546 = vmul.f32 %v525, %v544
    %v547 = vmul.f32 %v546, %v293
    %vm548 = vcmask 521220
    %v549 = vsel %vm548, %v547, 0.0
    %550 = vadd.xlane.f32.xlu0 %v549
    %v551 = vpop.xlane.xlu0 %550
    %vm552 = vcmp.eq.s32.totalorder %v173, 2
    %v554 = vrot.slane %v428, 6
    %v556 = vsel %vm552, %v551, %v554
    %v557 = vld [vmem:[#allocation2] sm:$0xc0]
    %v558 = vld [vmem:[#allocation2 + $0x8] sm:$0xc0]
    %v560 = vrot.slane %v546, 4
    %v561 = vsel %vm178, %v560, 0
    %563 = vmatprep.subr.mxu0 0.0
    %564 = vmatpush1.msra.mxu0 0.0
    %565 = vmatprep.subr.mxu0 0.0
    %566 = vmatpush1.msra.mxu0 0.0
    %567 = vmatprep.subr.mxu0 0.0
    %568 = vmatpush1.msra.mxu0 0.0
    %569 = vmatprep.subr.mxu0 0.0
    %570 = vmatpush1.msra.mxu0 0.0
    %571 = vmatprep.subr.mxu0 0.0
    %572 = vmatpush1.msra.mxu0 0.0
    %573 = vmatprep.subr.mxu0 0.0
    %574 = vmatpush1.msra.mxu0 0.0
    %575 = vmatprep.subr.mxu0 0.0
    %576 = vmatpush1.msra.mxu0 0.0
    %577 = vmatprep.subr.mxu0 0.0
    %578 = vmatpush1.msra.mxu0 0.0
    %579 = vmatprep.subr.mxu0 %v170
    %580 = vmatpush1.msra.mxu0 %v169
    %581 = vmatprep.subr.mxu0 %v168
    %582 = vmatpush1.msra.mxu0 %v167
    %583 = vmatprep.subr.mxu0 %v166
    %584 = vmatpush1.msra.mxu0 %v165
    %585 = vmatprep.subr.mxu0 %v164
    %586 = vmatpush1.msra.mxu0 %v163
    %587 = vmatprep.subr.mxu0 %v162
    %588 = vmatpush1.msra.mxu0 %v161
    %589 = vmatprep.subr.mxu0 %v160
    %590 = vmatpush1.msra.mxu0 %v159
    %591 = vmatprep.subr.mxu0 %v158
    %592 = vmatpush1.msra.mxu0 %v157
    %593 = vmatprep.subr.mxu0 %v156
    %594 = vmatpush1.msra.mxu0 %v155
    %595 = vmatprep.subr.mxu0 0.0
    %596 = vmatpush2.msra.mxu0 0.0
    %597 = vmatprep.subr.mxu0 0.0
    %598 = vmatpush2.msra.mxu0 0.0
    %599 = vmatprep.subr.mxu0 0.0
    %600 = vmatpush2.msra.mxu0 0.0
    %601 = vmatprep.subr.mxu0 0.0
    %602 = vmatpush2.msra.mxu0 0.0
    %603 = vmatprep.subr.mxu0 0.0
    %604 = vmatpush2.msra.mxu0 0.0
    %605 = vmatprep.subr.mxu0 0.0
    %606 = vmatpush2.msra.mxu0 0.0
    %607 = vmatprep.subr.mxu0 0.0
    %608 = vmatpush2.msra.mxu0 0.0
    %609 = vmatprep.subr.mxu0 0.0
    %610 = vmatpush2.msra.mxu0 0.0
    %611 = vmatprep.subr.mxu0 0.0
    %612 = vmatpush2.msra.mxu0 0.0
    %613 = vmatprep.subr.mxu0 0.0
    %614 = vmatpush2.msra.mxu0 0.0
    %615 = vmatprep.subr.mxu0 0.0
    %616 = vmatpush2.msra.mxu0 0.0
    %617 = vmatprep.subr.mxu0 0.0
    %618 = vmatpush2.msra.mxu0 0.0
    %619 = vmatprep.subr.mxu0 0.0
    %620 = vmatpush2.msra.mxu0 0.0
    %621 = vmatprep.subr.mxu0 0.0
    %622 = vmatpush2.msra.mxu0 0.0
    %623 = vmatprep.subr.mxu0 0.0
    %624 = vmatpush2.msra.mxu0 0.0
    %625 = vmatprep.subr.mxu0 0.0
    %626 = vmatpush2.msra.mxu0 0.0
    %627 = vmatprep.mubr.f32.mxu0 0.0
    %628 = vmatmul.mubr.f32.gmra.mxu0 %v561
    %v629 = vpop.f32.mrf.mxu0
    %v630 = vadd.f32 0.0, %v629
    %v631 = vpop.f32.mrf.mxu0
    %v632 = vadd.f32 0.0, %v631
    %633 = vdwg.mxu0
    %v636 = vrot.slane %v630, 2
    %v637 = vrot.slane %v632, 2
    %v640 = vadd.f32 %v557, %v636
    %v641 = vadd.f32 %v558, %v637
    %v642 = vxor.u32 %v640, 2147483648
    %v643 = vxor.u32 %v641, 2147483648
    %v644 = vmul.f32 %v642, 1.442695
    %v645 = vpow.pop %v644
    %v646 = vmul.f32 %v643, 1.442695
    %v647 = vpow.pop %v646
    %v648 = vadd.f32 %v645, 1.0
    %v649 = vadd.f32 %v647, 1.0
    %v650 = vrcp.pop %v648
    %v651 = vmul.f32 1.0, %v650
    %v652 = vrcp.pop %v649
    %v653 = vmul.f32 1.0, %v652
    %v654 = vtanh.pop %v641
    %v656 = vrot.slane %v540, 6
    %v658 = vmul.f32 %v651, %v656
    %660 = vrot.lane.b32.xlu0 %v654, 64
    %v661 = vpop.permute.xlu0 %660
    %v663 = vmul.f32 %v651, %v661
    %665 = vrot.lane.b32.xlu0 %v663, 64
    %v666 = vpop.permute.xlu0 %665
    %v668 = vadd.f32 %v658, %v666
    %v669 = vtanh.pop %v668
    %671 = vrot.lane.b32.xlu0 %v669, 64
    %v672 = vpop.permute.xlu0 %671
    %v674 = vmul.f32 %v653, %v672
    %v675 = vmul.f32 %v674, %v293
    %vm676 = vcmask 523270
    %v677 = vsel %vm676, %v675, 0.0
    %678 = vadd.xlane.f32.xlu0 %v677
    %v679 = vpop.xlane.xlu0 %678
    %vm680 = vcmp.eq.s32.totalorder %v173, 3
    %v682 = vrot.slane %v556, 6
    %v684 = vsel %vm680, %v679, %v682
    %v685 = vld [vmem:[#allocation2 + $0x10] sm:$0x3]
    %v686 = vld [vmem:[#allocation2 + $0x18] sm:$0x3]
    %v688 = vrot.slane %v674, 6
    %v689 = vsel %vm178, %v688, 0
    %691 = vmatprep.subr.mxu0 0.0
    %692 = vmatpush1.msra.mxu0 0.0
    %693 = vmatprep.subr.mxu0 0.0
    %694 = vmatpush1.msra.mxu0 0.0
    %695 = vmatprep.subr.mxu0 0.0
    %696 = vmatpush1.msra.mxu0 0.0
    %697 = vmatprep.subr.mxu0 0.0
    %698 = vmatpush1.msra.mxu0 0.0
    %699 = vmatprep.subr.mxu0 0.0
    %700 = vmatpush1.msra.mxu0 0.0
    %701 = vmatprep.subr.mxu0 0.0
    %702 = vmatpush1.msra.mxu0 0.0
    %703 = vmatprep.subr.mxu0 0.0
    %704 = vmatpush1.msra.mxu0 0.0
    %705 = vmatprep.subr.mxu0 0.0
    %706 = vmatpush1.msra.mxu0 0.0
    %707 = vmatprep.subr.mxu0 %v170
    %708 = vmatpush1.msra.mxu0 %v169
    %709 = vmatprep.subr.mxu0 %v168
    %710 = vmatpush1.msra.mxu0 %v167
    %711 = vmatprep.subr.mxu0 %v166
    %712 = vmatpush1.msra.mxu0 %v165
    %713 = vmatprep.subr.mxu0 %v164
    %714 = vmatpush1.msra.mxu0 %v163
    %715 = vmatprep.subr.mxu0 %v162
    %716 = vmatpush1.msra.mxu0 %v161
    %717 = vmatprep.subr.mxu0 %v160
    %718 = vmatpush1.msra.mxu0 %v159
    %719 = vmatprep.subr.mxu0 %v158
    %720 = vmatpush1.msra.mxu0 %v157
    %721 = vmatprep.subr.mxu0 %v156
    %722 = vmatpush1.msra.mxu0 %v155
    %723 = vmatprep.subr.mxu0 0.0
    %724 = vmatpush2.msra.mxu0 0.0
    %725 = vmatprep.subr.mxu0 0.0
    %726 = vmatpush2.msra.mxu0 0.0
    %727 = vmatprep.subr.mxu0 0.0
    %728 = vmatpush2.msra.mxu0 0.0
    %729 = vmatprep.subr.mxu0 0.0
    %730 = vmatpush2.msra.mxu0 0.0
    %731 = vmatprep.subr.mxu0 0.0
    %732 = vmatpush2.msra.mxu0 0.0
    %733 = vmatprep.subr.mxu0 0.0
    %734 = vmatpush2.msra.mxu0 0.0
    %735 = vmatprep.subr.mxu0 0.0
    %736 = vmatpush2.msra.mxu0 0.0
    %737 = vmatprep.subr.mxu0 0.0
    %738 = vmatpush2.msra.mxu0 0.0
    %739 = vmatprep.subr.mxu0 0.0
    %740 = vmatpush2.msra.mxu0 0.0
    %741 = vmatprep.subr.mxu0 0.0
    %742 = vmatpush2.msra.mxu0 0.0
    %743 = vmatprep.subr.mxu0 0.0
    %744 = vmatpush2.msra.mxu0 0.0
    %745 = vmatprep.subr.mxu0 0.0
    %746 = vmatpush2.msra.mxu0 0.0
    %747 = vmatprep.subr.mxu0 0.0
    %748 = vmatpush2.msra.mxu0 0.0
    %749 = vmatprep.subr.mxu0 0.0
    %750 = vmatpush2.msra.mxu0 0.0
    %751 = vmatprep.subr.mxu0 0.0
    %752 = vmatpush2.msra.mxu0 0.0
    %753 = vmatprep.subr.mxu0 0.0
    %754 = vmatpush2.msra.mxu0 0.0
    %755 = vmatprep.mubr.f32.mxu0 0.0
    %756 = vmatmul.mubr.f32.gmra.mxu0 %v689
    %v757 = vpop.f32.mrf.mxu0
    %v758 = vadd.f32 0.0, %v757
    %v759 = vpop.f32.mrf.mxu0
    %v760 = vadd.f32 0.0, %v759
    %761 = vdwg.mxu0
    %v762 = vadd.f32 %v685, %v758
    %v763 = vadd.f32 %v686, %v760
    %v764 = vxor.u32 %v762, 2147483648
    %v765 = vxor.u32 %v763, 2147483648
    %v766 = vmul.f32 %v764, 1.442695
    %v767 = vpow.pop %v766
    %v768 = vmul.f32 %v765, 1.442695
    %v769 = vpow.pop %v768
    %v770 = vadd.f32 %v767, 1.0
    %v771 = vadd.f32 %v769, 1.0
    %v772 = vrcp.pop %v770
    %v773 = vmul.f32 1.0, %v772
    %v774 = vrcp.pop %v771
    %v775 = vmul.f32 1.0, %v774
    %v776 = vtanh.pop %v763
    %v778 = vrot.slane %v668, 6
    %v780 = vmul.f32 %v773, %v778
    %782 = vrot.lane.b32.xlu0 %v776, 64
    %v783 = vpop.permute.xlu0 %782
    %v785 = vmul.f32 %v773, %v783
    %787 = vrot.lane.b32.xlu0 %v785, 64
    %v788 = vpop.permute.xlu0 %787
    %v790 = vadd.f32 %v780, %v788
    %v791 = vtanh.pop %v790
    %793 = vrot.lane.b32.xlu0 %v791, 64
    %v794 = vpop.permute.xlu0 %793
    %v796 = vmul.f32 %v775, %v794
    %v797 = vmul.f32 %v796, %v293
    %v798 = vsel %vm296, %v797, 0.0
    %799 = vadd.xlane.f32.xlu0 %v798
    %v800 = vpop.xlane.xlu0 %799
    %vm801 = vcmp.eq.s32.totalorder %v173, 4
    %v803 = vrot.slane %v684, 6
    %v805 = vsel %vm801, %v800, %v803
    %v806 = vld [vmem:[#allocation2 + $0x10] sm:$0xc]
    %v807 = vld [vmem:[#allocation2 + $0x18] sm:$0xc]
    %v809 = vsel %vm178, %v796, 0
    %811 = vmatprep.subr.mxu0 0.0
    %812 = vmatpush1.msra.mxu0 0.0
    %813 = vmatprep.subr.mxu0 0.0
    %814 = vmatpush1.msra.mxu0 0.0
    %815 = vmatprep.subr.mxu0 0.0
    %816 = vmatpush1.msra.mxu0 0.0
    %817 = vmatprep.subr.mxu0 0.0
    %818 = vmatpush1.msra.mxu0 0.0
    %819 = vmatprep.subr.mxu0 0.0
    %820 = vmatpush1.msra.mxu0 0.0
    %821 = vmatprep.subr.mxu0 0.0
    %822 = vmatpush1.msra.mxu0 0.0
    %823 = vmatprep.subr.mxu0 0.0
    %824 = vmatpush1.msra.mxu0 0.0
    %825 = vmatprep.subr.mxu0 0.0
    %826 = vmatpush1.msra.mxu0 0.0
    %827 = vmatprep.subr.mxu0 %v170
    %828 = vmatpush1.msra.mxu0 %v169
    %829 = vmatprep.subr.mxu0 %v168
    %830 = vmatpush1.msra.mxu0 %v167
    %831 = vmatprep.subr.mxu0 %v166
    %832 = vmatpush1.msra.mxu0 %v165
    %833 = vmatprep.subr.mxu0 %v164
    %834 = vmatpush1.msra.mxu0 %v163
    %835 = vmatprep.subr.mxu0 %v162
    %836 = vmatpush1.msra.mxu0 %v161
    %837 = vmatprep.subr.mxu0 %v160
    %838 = vmatpush1.msra.mxu0 %v159
    %839 = vmatprep.subr.mxu0 %v158
    %840 = vmatpush1.msra.mxu0 %v157
    %841 = vmatprep.subr.mxu0 %v156
    %842 = vmatpush1.msra.mxu0 %v155
    %843 = vmatprep.subr.mxu0 0.0
    %844 = vmatpush2.msra.mxu0 0.0
    %845 = vmatprep.subr.mxu0 0.0
    %846 = vmatpush2.msra.mxu0 0.0
    %847 = vmatprep.subr.mxu0 0.0
    %848 = vmatpush2.msra.mxu0 0.0
    %849 = vmatprep.subr.mxu0 0.0
    %850 = vmatpush2.msra.mxu0 0.0
    %851 = vmatprep.subr.mxu0 0.0
    %852 = vmatpush2.msra.mxu0 0.0
    %853 = vmatprep.subr.mxu0 0.0
    %854 = vmatpush2.msra.mxu0 0.0
    %855 = vmatprep.subr.mxu0 0.0
    %856 = vmatpush2.msra.mxu0 0.0
    %857 = vmatprep.subr.mxu0 0.0
    %858 = vmatpush2.msra.mxu0 0.0
    %859 = vmatprep.subr.mxu0 0.0
    %860 = vmatpush2.msra.mxu0 0.0
    %861 = vmatprep.subr.mxu0 0.0
    %862 = vmatpush2.msra.mxu0 0.0
    %863 = vmatprep.subr.mxu0 0.0
    %864 = vmatpush2.msra.mxu0 0.0
    %865 = vmatprep.subr.mxu0 0.0
    %866 = vmatpush2.msra.mxu0 0.0
    %867 = vmatprep.subr.mxu0 0.0
    %868 = vmatpush2.msra.mxu0 0.0
    %869 = vmatprep.subr.mxu0 0.0
    %870 = vmatpush2.msra.mxu0 0.0
    %871 = vmatprep.subr.mxu0 0.0
    %872 = vmatpush2.msra.mxu0 0.0
    %873 = vmatprep.subr.mxu0 0.0
    %874 = vmatpush2.msra.mxu0 0.0
    %875 = vmatprep.mubr.f32.mxu0 0.0
    %876 = vmatmul.mubr.f32.gmra.mxu0 %v809
    %v877 = vpop.f32.mrf.mxu0
    %v878 = vadd.f32 0.0, %v877
    %v879 = vpop.f32.mrf.mxu0
    %v880 = vadd.f32 0.0, %v879
    %881 = vdwg.mxu0
    %v884 = vrot.slane %v878, 6
    %v885 = vrot.slane %v880, 6
    %v888 = vadd.f32 %v806, %v884
    %v889 = vadd.f32 %v807, %v885
    %v890 = vxor.u32 %v888, 2147483648
    %v891 = vxor.u32 %v889, 2147483648
    %v892 = vmul.f32 %v890, 1.442695
    %v893 = vpow.pop %v892
    %v894 = vmul.f32 %v891, 1.442695
    %v895 = vpow.pop %v894
    %v896 = vadd.f32 %v893, 1.0
    %v897 = vadd.f32 %v895, 1.0
    %v898 = vrcp.pop %v896
    %v899 = vmul.f32 1.0, %v898
    %v900 = vrcp.pop %v897
    %v901 = vmul.f32 1.0, %v900
    %v902 = vtanh.pop %v889
    %v904 = vrot.slane %v790, 6
    %v906 = vmul.f32 %v899, %v904
    %908 = vrot.lane.b32.xlu0 %v902, 64
    %v909 = vpop.permute.xlu0 %908
    %v911 = vmul.f32 %v899, %v909
    %913 = vrot.lane.b32.xlu0 %v911, 64
    %v914 = vpop.permute.xlu0 %913
    %v916 = vadd.f32 %v906, %v914
    %v917 = vtanh.pop %v916
    %919 = vrot.lane.b32.xlu0 %v917, 64
    %v920 = vpop.permute.xlu0 %919
    %v922 = vmul.f32 %v901, %v920
    %v923 = vmul.f32 %v922, %v293
    %v924 = vsel %vm420, %v923, 0.0
    %925 = vadd.xlane.f32.xlu0 %v924
    %v926 = vpop.xlane.xlu0 %925
    %vm927 = vcmp.eq.s32.totalorder %v173, 5
    %v929 = vrot.slane %v805, 6
    %v931 = vsel %vm927, %v926, %v929
    %v932 = vld [vmem:[#allocation2 + $0x10] sm:$0x30]
    %v933 = vld [vmem:[#allocation2 + $0x18] sm:$0x30]
    %v935 = vrot.slane %v922, 2
    %v936 = vsel %vm178, %v935, 0
    %938 = vmatprep.subr.mxu0 0.0
    %939 = vmatpush1.msra.mxu0 0.0
    %940 = vmatprep.subr.mxu0 0.0
    %941 = vmatpush1.msra.mxu0 0.0
    %942 = vmatprep.subr.mxu0 0.0
    %943 = vmatpush1.msra.mxu0 0.0
    %944 = vmatprep.subr.mxu0 0.0
    %945 = vmatpush1.msra.mxu0 0.0
    %946 = vmatprep.subr.mxu0 0.0
    %947 = vmatpush1.msra.mxu0 0.0
    %948 = vmatprep.subr.mxu0 0.0
    %949 = vmatpush1.msra.mxu0 0.0
    %950 = vmatprep.subr.mxu0 0.0
    %951 = vmatpush1.msra.mxu0 0.0
    %952 = vmatprep.subr.mxu0 0.0
    %953 = vmatpush1.msra.mxu0 0.0
    %954 = vmatprep.subr.mxu0 %v170
    %955 = vmatpush1.msra.mxu0 %v169
    %956 = vmatprep.subr.mxu0 %v168
    %957 = vmatpush1.msra.mxu0 %v167
    %958 = vmatprep.subr.mxu0 %v166
    %959 = vmatpush1.msra.mxu0 %v165
    %960 = vmatprep.subr.mxu0 %v164
    %961 = vmatpush1.msra.mxu0 %v163
    %962 = vmatprep.subr.mxu0 %v162
    %963 = vmatpush1.msra.mxu0 %v161
    %964 = vmatprep.subr.mxu0 %v160
    %965 = vmatpush1.msra.mxu0 %v159
    %966 = vmatprep.subr.mxu0 %v158
    %967 = vmatpush1.msra.mxu0 %v157
    %968 = vmatprep.subr.mxu0 %v156
    %969 = vmatpush1.msra.mxu0 %v155
    %970 = vmatprep.subr.mxu0 0.0
    %971 = vmatpush2.msra.mxu0 0.0
    %972 = vmatprep.subr.mxu0 0.0
    %973 = vmatpush2.msra.mxu0 0.0
    %974 = vmatprep.subr.mxu0 0.0
    %975 = vmatpush2.msra.mxu0 0.0
    %976 = vmatprep.subr.mxu0 0.0
    %977 = vmatpush2.msra.mxu0 0.0
    %978 = vmatprep.subr.mxu0 0.0
    %979 = vmatpush2.msra.mxu0 0.0
    %980 = vmatprep.subr.mxu0 0.0
    %981 = vmatpush2.msra.mxu0 0.0
    %982 = vmatprep.subr.mxu0 0.0
    %983 = vmatpush2.msra.mxu0 0.0
    %984 = vmatprep.subr.mxu0 0.0
    %985 = vmatpush2.msra.mxu0 0.0
    %986 = vmatprep.subr.mxu0 0.0
    %987 = vmatpush2.msra.mxu0 0.0
    %988 = vmatprep.subr.mxu0 0.0
    %989 = vmatpush2.msra.mxu0 0.0
    %990 = vmatprep.subr.mxu0 0.0
    %991 = vmatpush2.msra.mxu0 0.0
    %992 = vmatprep.subr.mxu0 0.0
    %993 = vmatpush2.msra.mxu0 0.0
    %994 = vmatprep.subr.mxu0 0.0
    %995 = vmatpush2.msra.mxu0 0.0
    %996 = vmatprep.subr.mxu0 0.0
    %997 = vmatpush2.msra.mxu0 0.0
    %998 = vmatprep.subr.mxu0 0.0
    %999 = vmatpush2.msra.mxu0 0.0
    %1000 = vmatprep.subr.mxu0 0.0
    %1001 = vmatpush2.msra.mxu0 0.0
    %1002 = vmatprep.mubr.f32.mxu0 0.0
    %1003 = vmatmul.mubr.f32.gmra.mxu0 %v936
    %v1004 = vpop.f32.mrf.mxu0
    %v1005 = vadd.f32 0.0, %v1004
    %v1006 = vpop.f32.mrf.mxu0
    %v1007 = vadd.f32 0.0, %v1006
    %1008 = vdwg.mxu0
    %v1011 = vrot.slane %v1005, 4
    %v1012 = vrot.slane %v1007, 4
    %v1015 = vadd.f32 %v932, %v1011
    %v1016 = vadd.f32 %v933, %v1012
    %v1017 = vxor.u32 %v1015, 2147483648
    %v1018 = vxor.u32 %v1016, 2147483648
    %v1019 = vmul.f32 %v1017, 1.442695
    %v1020 = vpow.pop %v1019
    %v1021 = vmul.f32 %v1018, 1.442695
    %v1022 = vpow.pop %v1021
    %v1023 = vadd.f32 %v1020, 1.0
    %v1024 = vadd.f32 %v1022, 1.0
    %v1025 = vrcp.pop %v1023
    %v1026 = vmul.f32 1.0, %v1025
    %v1027 = vrcp.pop %v1024
    %v1028 = vmul.f32 1.0, %v1027
    %v1029 = vtanh.pop %v1016
    %v1031 = vrot.slane %v916, 6
    %v1033 = vmul.f32 %v1026, %v1031
    %1035 = vrot.lane.b32.xlu0 %v1029, 64
    %v1036 = vpop.permute.xlu0 %1035
    %v1038 = vmul.f32 %v1026, %v1036
    %1040 = vrot.lane.b32.xlu0 %v1038, 64
    %v1041 = vpop.permute.xlu0 %1040
    %v1043 = vadd.f32 %v1033, %v1041
    %v1044 = vtanh.pop %v1043
    %1046 = vrot.lane.b32.xlu0 %v1044, 64
    %v1047 = vpop.permute.xlu0 %1046
    %v1049 = vmul.f32 %v1028, %v1047
    %v1050 = vmul.f32 %v1049, %v293
    %v1051 = vsel %vm548, %v1050, 0.0
    %1052 = vadd.xlane.f32.xlu0 %v1051
    %v1053 = vpop.xlane.xlu0 %1052
    %vm1054 = vcmp.eq.s32.totalorder %v173, 6
    %v1056 = vrot.slane %v931, 6
    %v1058 = vsel %vm1054, %v1053, %v1056
    %v1059 = vld [vmem:[#allocation2 + $0x10] sm:$0xc0]
    %v1060 = vld [vmem:[#allocation2 + $0x18] sm:$0xc0]
    %v1062 = vrot.slane %v1049, 4
    %v1063 = vsel %vm178, %v1062, 0
    %1065 = vmatprep.subr.mxu0 0.0
    %1066 = vmatpush1.msra.mxu0 0.0
    %1067 = vmatprep.subr.mxu0 0.0
    %1068 = vmatpush1.msra.mxu0 0.0
    %1069 = vmatprep.subr.mxu0 0.0
    %1070 = vmatpush1.msra.mxu0 0.0
    %1071 = vmatprep.subr.mxu0 0.0
    %1072 = vmatpush1.msra.mxu0 0.0
    %1073 = vmatprep.subr.mxu0 0.0
    %1074 = vmatpush1.msra.mxu0 0.0
    %1075 = vmatprep.subr.mxu0 0.0
    %1076 = vmatpush1.msra.mxu0 0.0
    %1077 = vmatprep.subr.mxu0 0.0
    %1078 = vmatpush1.msra.mxu0 0.0
    %1079 = vmatprep.subr.mxu0 0.0
    %1080 = vmatpush1.msra.mxu0 0.0
    %1081 = vmatprep.subr.mxu0 %v170
    %1082 = vmatpush1.msra.mxu0 %v169
    %1083 = vmatprep.subr.mxu0 %v168
    %1084 = vmatpush1.msra.mxu0 %v167
    %1085 = vmatprep.subr.mxu0 %v166
    %1086 = vmatpush1.msra.mxu0 %v165
    %1087 = vmatprep.subr.mxu0 %v164
    %1088 = vmatpush1.msra.mxu0 %v163
    %1089 = vmatprep.subr.mxu0 %v162
    %1090 = vmatpush1.msra.mxu0 %v161
    %1091 = vmatprep.subr.mxu0 %v160
    %1092 = vmatpush1.msra.mxu0 %v159
    %1093 = vmatprep.subr.mxu0 %v158
    %1094 = vmatpush1.msra.mxu0 %v157
    %1095 = vmatprep.subr.mxu0 %v156
    %1096 = vmatpush1.msra.mxu0 %v155
    %1097 = vmatprep.subr.mxu0 0.0
    %1098 = vmatpush2.msra.mxu0 0.0
    %1099 = vmatprep.subr.mxu0 0.0
    %1100 = vmatpush2.msra.mxu0 0.0
    %1101 = vmatprep.subr.mxu0 0.0
    %1102 = vmatpush2.msra.mxu0 0.0
    %1103 = vmatprep.subr.mxu0 0.0
    %1104 = vmatpush2.msra.mxu0 0.0
    %1105 = vmatprep.subr.mxu0 0.0
    %1106 = vmatpush2.msra.mxu0 0.0
    %1107 = vmatprep.subr.mxu0 0.0
    %1108 = vmatpush2.msra.mxu0 0.0
    %1109 = vmatprep.subr.mxu0 0.0
    %1110 = vmatpush2.msra.mxu0 0.0
    %1111 = vmatprep.subr.mxu0 0.0
    %1112 = vmatpush2.msra.mxu0 0.0
    %1113 = vmatprep.subr.mxu0 0.0
    %1114 = vmatpush2.msra.mxu0 0.0
    %1115 = vmatprep.subr.mxu0 0.0
    %1116 = vmatpush2.msra.mxu0 0.0
    %1117 = vmatprep.subr.mxu0 0.0
    %1118 = vmatpush2.msra.mxu0 0.0
    %1119 = vmatprep.subr.mxu0 0.0
    %1120 = vmatpush2.msra.mxu0 0.0
    %1121 = vmatprep.subr.mxu0 0.0
    %1122 = vmatpush2.msra.mxu0 0.0
    %1123 = vmatprep.subr.mxu0 0.0
    %1124 = vmatpush2.msra.mxu0 0.0
    %1125 = vmatprep.subr.mxu0 0.0
    %1126 = vmatpush2.msra.mxu0 0.0
    %1127 = vmatprep.subr.mxu0 0.0
    %1128 = vmatpush2.msra.mxu0 0.0
    %1129 = vmatprep.mubr.f32.mxu0 0.0
    %1130 = vmatmul.mubr.f32.gmra.mxu0 %v1063
    %v1131 = vpop.f32.mrf.mxu0
    %v1132 = vadd.f32 0.0, %v1131
    %v1133 = vpop.f32.mrf.mxu0
    %v1134 = vadd.f32 0.0, %v1133
    %1135 = vdwg.mxu0
    %v1138 = vrot.slane %v1132, 2
    %v1139 = vrot.slane %v1134, 2
    %v1142 = vadd.f32 %v1059, %v1138
    %v1143 = vadd.f32 %v1060, %v1139
    %v1144 = vxor.u32 %v1142, 2147483648
    %v1145 = vxor.u32 %v1143, 2147483648
    %v1146 = vmul.f32 %v1144, 1.442695
    %v1147 = vpow.pop %v1146
    %v1148 = vmul.f32 %v1145, 1.442695
    %v1149 = vpow.pop %v1148
    %v1150 = vadd.f32 %v1147, 1.0
    %v1151 = vadd.f32 %v1149, 1.0
    %v1152 = vrcp.pop %v1150
    %v1153 = vmul.f32 1.0, %v1152
    %v1154 = vrcp.pop %v1151
    %v1155 = vmul.f32 1.0, %v1154
    %v1156 = vtanh.pop %v1143
    %v1158 = vrot.slane %v1043, 6
    %v1160 = vmul.f32 %v1153, %v1158
    %1162 = vrot.lane.b32.xlu0 %v1156, 64
    %v1163 = vpop.permute.xlu0 %1162
    %v1165 = vmul.f32 %v1153, %v1163
    %1167 = vrot.lane.b32.xlu0 %v1165, 64
    %v1168 = vpop.permute.xlu0 %1167
    %v1170 = vadd.f32 %v1160, %v1168
    %v1171 = vtanh.pop %v1170
    %1173 = vrot.lane.b32.xlu0 %v1171, 64
    %v1174 = vpop.permute.xlu0 %1173
    %v1176 = vmul.f32 %v1155, %v1174
    %v1177 = vmul.f32 %v1176, %v293
    %v1178 = vsel %vm676, %v1177, 0.0
    %1179 = vadd.xlane.f32.xlu0 %v1178
    %v1180 = vpop.xlane.xlu0 %1179
    %vm1181 = vcmp.eq.s32.totalorder %v173, 7
    %v1183 = vrot.slane %v1058, 6
    %v1185 = vsel %vm1181, %v1180, %v1183
    %s1186 = sld [smem:[#allocation3]]
    %v1187 = vstv %s1186
    %v1188 = vadd.f32 %v1185, %v1187
    %vm1189 = vcmask 64518
    %1190 = vst.msk [vmem:[#allocation7 - $0x6] sm:$0xc0] %vm1189, %v1188
    %1191 = vst.msk [vmem:[#allocation8 - $0x6] sm:$0xc0] %vm676, %v1176
    %1193 = vrot.lane.b32.xlu0 %v1170, 64
    %v1194 = vpop.permute.xlu0 %1193
    %1196 = vst.msk [vmem:[#allocation10 - $0x6] sm:$0xc0] %vm676, %v1194
    // Predicated region
    $region38: #{rnn_stock_forward.1} parent=1 // pred_check
      _
    $region39: #{rnn_stock_forward.1} parent=1 // pred_check_branch
      %1198 = sbr.rel (0) target = $region41
    $region40: #{rnn_stock_forward.1} parent=1 // pred_region
      %s1200 = ssub.s32 32, 32
      %1201 = vsyncadd [#allocation6], %s1200
      %s1203 = sshll.u32 [#allocation7], 4
      %s1204 = int_to_ptr.vmem [resolvable:$true] %s1203
      %1206 = dma.vmem_to_hbm [thread:$0]  %s1204, 32, %s8, [#allocation6]
    $region41: #{rnn_stock_forward.1} parent=1 // pred_fallthru
      _
    // Predicated region
    $region42: #{rnn_stock_forward.1} parent=1 // pred_check
      _
    $region43: #{rnn_stock_forward.1} parent=1 // pred_check_branch
      %1208 = sbr.rel (0) target = $region45
    $region44: #{rnn_stock_forward.1} parent=1 // pred_region
      %s1210 = ssub.s32 32, 32
      %1211 = vsyncadd [#allocation9], %s1210
      %s1213 = sshll.u32 [#allocation8], 4
      %s1214 = int_to_ptr.vmem [resolvable:$true] %s1213
      %1216 = dma.vmem_to_hbm [thread:$0]  %s1214, 32, %s9, [#allocation9]
    $region45: #{rnn_stock_forward.1} parent=1 // pred_fallthru
      _
    // Predicated region
    $region46: #{rnn_stock_forward.1} parent=1 // pred_check
      _
    $region47: #{rnn_stock_forward.1} parent=1 // pred_check_branch
      %1218 = sbr.rel (0) target = $region49
    $region48: #{rnn_stock_forward.1} parent=1 // pred_region
      %s1220 = ssub.s32 32, 32
      %1221 = vsyncadd [#allocation9], %s1220
      %s1223 = sshll.u32 [#allocation10], 4
      %s1224 = int_to_ptr.vmem [resolvable:$true] %s1223
      %1226 = dma.vmem_to_hbm [thread:$0]  %s1224, 32, %s10, [#allocation9]
    $region49: #{rnn_stock_forward.1} parent=1 // pred_fallthru
      _
    // Predicated region
    $region50: #{rnn_stock_forward.1} parent=1 // pred_check
      _
    $region51: #{rnn_stock_forward.1} parent=1 // pred_check_branch
      %1228 = sbr.rel (0) target = $region53
    $region52: #{rnn_stock_forward.1} parent=1 // pred_region
      %1229 = dma.done [#allocation6], 32
    $region53: #{rnn_stock_forward.1} parent=1 // pred_fallthru
      _
    // Predicated region
    $region54: #{rnn_stock_forward.1} parent=1 // pred_check
      _
    $region55: #{rnn_stock_forward.1} parent=1 // pred_check_branch
      %1231 = sbr.rel (0) target = $region57
    $region56: #{rnn_stock_forward.1} parent=1 // pred_region
      %1232 = dma.done [#allocation9], 32
    $region57: #{rnn_stock_forward.1} parent=1 // pred_fallthru
      _
    // Predicated region
    $region58: #{rnn_stock_forward.1} parent=1 // pred_check
      _
    $region59: #{rnn_stock_forward.1} parent=1 // pred_check_branch
      %1234 = sbr.rel (0) target = $region61
    $region60: #{rnn_stock_forward.1} parent=1 // pred_region
      %1235 = dma.done [#allocation9], 32
    $region61: #{rnn_stock_forward.1} parent=1 // pred_fallthru
      _
    %1236 = vsyncpa [#allocation5], 1
    %1237 = vsyncpa [#allocation6], 1
    %1238 = vsyncpa [#allocation9], 1

</llo_original>
